<compile_context>
chip_gen: v7x
topology: tpu7x:2x2x1
jax: 0.10.0
libtpu: 0.0.40
codegen_flags: <defaults>
</compile_context>

<pallas_src>
import jax
import jax.numpy as jnp
from jax import lax
from jax.experimental import pallas as pl
from jax.experimental.pallas import tpu as pltpu


def _round_up(x, m):
    return (x + m - 1) // m * m


def _choose_row_tile(ho, wp, cout_p, acc_budget_bytes=128 * 1024):
    """Largest divisor of `ho` whose f32 accumulator (th*wp, cout_p) fits the budget."""
    best = 1
    for th in range(1, ho + 1):
        if ho % th == 0 and th * wp * cout_p * 4 <= acc_budget_bytes:
            best = th
    return best


def _make_kernel(K, Wp, M, Cout_p):
    # M = TH * Wp : flattened (rows * padded-cols) of one output tile == matmul M dim.
    def kernel(x_ref, w_ref, scale_ref, bias_ref, o_ref):
        # x_ref:     (1, Hp*Wp, Cin)   bf16 -- whole padded image (H,W flattened), one batch elem
        # w_ref:     (K, K, Cin, Cout_p) bf16
        # scale_ref: (1, Cout_p)       f32  -- folded BN scale
        # bias_ref:  (1, Cout_p)       f32  -- folded BN bias
        # o_ref:     (1, M, Cout_p)    f32  -- one row tile, all Wp columns (junk cols cut outside)
        r = pl.program_id(1)
        base = r * M                       # flat offset of padded row r*TH (multiple of Wp, Wp%8==0)

        acc = jnp.zeros((M, Cout_p), jnp.float32)
        # Horner over the kw taps:
        #   out = S_0 + shift1(S_1 + shift1(S_2)),   S_kw = sum_kh rows(kh) @ W[kh, kw]
        # where shift1(A)[i] = A[i+1] along the flattened (row*Wp) axis.  Wrap/bleed of the
        # roll only lands in the extra right-pad columns (w >= Wo), which are discarded.
        for kw in reversed(range(K)):
            if kw != K - 1:
                # shift by -1 == jnp.roll(acc, M-1, axis=0); rides the XLU slot.
                acc = pltpu.roll(acc, M - 1, axis=0)
            for kh in range(K):
                start = pl.multiple_of(base + kh * Wp, 8)          # 8-aligned sublane slice
                rows = x_ref[0, pl.ds(start, M), :]                # (M, Cin) bf16, contiguous
                acc = acc + jnp.dot(rows, w_ref[kh, kw],
                                    preferred_element_type=jnp.float32)

        # fused BatchNorm (inference) + SiLU, f32 epilogue
        y = acc * scale_ref[...] + bias_ref[...]
        y = y * jax.nn.sigmoid(y)
        o_ref[0] = y.astype(o_ref.dtype)

    return kernel


def conv_bn_silu(x_nchw, w_hwio, bn_gamma, bn_beta, bn_mean, bn_var, eps=1e-5):
    """Conv2d(k, s=1, p=k//2, g=1, d=1, bias=False) + BatchNorm2d(eval) + SiLU.

    x_nchw: (N, Cin, H, W) f32  ->  (N, Cout, H, W) f32.
    """
    # TODO(synk): stride>1, groups>1, dilation>1 variants of Conv are not implemented here.
    N, Cin, H, W = x_nchw.shape
    K, K2, Cin_w, Cout = w_hwio.shape
    assert K == K2 and Cin_w == Cin and K % 2 == 1
    pad = K // 2
    Ho, Wo = H, W                                   # stride 1

    # lane-dense channel padding + sublane-aligned width
    Cout_p = max(128, _round_up(Cout, 128))
    Wp = _round_up(W + 2 * pad, 8)                  # padded width, multiple of 8 (sublane)
    Hp = H + 2 * pad

    # fold BN into per-channel (scale, bias), f32
    scale = bn_gamma / jnp.sqrt(bn_var + eps)
    bias = bn_beta - bn_mean * scale
    scale_p = jnp.zeros((1, Cout_p), jnp.float32).at[0, :Cout].set(scale.astype(jnp.float32))
    bias_p = jnp.zeros((1, Cout_p), jnp.float32).at[0, :Cout].set(bias.astype(jnp.float32))

    # weights HWIO, Cout padded to Cout_p, bf16
    w_p = jnp.zeros((K, K, Cin, Cout_p), jnp.bfloat16).at[..., :Cout].set(
        w_hwio.astype(jnp.bfloat16))

    # NCHW -> NHWC, zero pad, flatten (H, W) so the kernel works on lane-dense 2-D slabs.
    # TODO(synk): transpose/pad glue still runs as separate XLA ops (one extra HBM pass over x);
    # could be fused into the kernel via masked edge taps.
    x_nhwc = jnp.transpose(x_nchw, (0, 2, 3, 1)).astype(jnp.bfloat16)
    x_pad = jnp.pad(x_nhwc, ((0, 0), (pad, pad), (pad, Wp - W - pad), (0, 0)))
    x_flat = x_pad.reshape(N, Hp * Wp, Cin)

    TH = _choose_row_tile(Ho, Wp, Cout_p)           # accumulator <= ~128 KiB (<= 32 vregs)
    R = Ho // TH
    M = TH * Wp

    kernel = _make_kernel(K, Wp, M, Cout_p)

    # rough double-buffered VMEM budget; keep an explicit (chip-safe) limit
    x_bytes = Hp * Wp * Cin * 2
    w_bytes = K * K * Cin * Cout_p * 2
    o_bytes = M * Cout_p * 4
    vmem_limit = int(max(2 * (x_bytes + w_bytes + o_bytes) + (2 << 20), 16 << 20))

    cost = pl.CostEstimate(
        flops=2 * N * Ho * Wp * K * K * Cin * Cout_p,
        transcendentals=N * Ho * Wp * Cout_p,
        bytes_accessed=N * (x_bytes + Ho * Wp * Cout_p * 4) + w_bytes,
    )

    out_flat = pl.pallas_call(
        kernel,
        out_shape=jax.ShapeDtypeStruct((N, Ho * Wp, Cout_p), jnp.float32),
        grid_spec=pltpu.PrefetchScalarGridSpec(
            num_scalar_prefetch=0,
            grid=(N, R),                             # row axis innermost: x DMA'd once per batch
            in_specs=[
                pl.BlockSpec((1, Hp * Wp, Cin), lambda n, r: (n, 0, 0)),
                pl.BlockSpec((K, K, Cin, Cout_p), lambda n, r: (0, 0, 0, 0)),
                pl.BlockSpec((1, Cout_p), lambda n, r: (0, 0)),
                pl.BlockSpec((1, Cout_p), lambda n, r: (0, 0)),
            ],
            out_specs=pl.BlockSpec((1, M, Cout_p), lambda n, r: (n, r, 0)),
        ),
        compiler_params=pltpu.CompilerParams(
            dimension_semantics=("parallel", "parallel"),   # batch + rows (2 TCs on v7x)
            vmem_limit_bytes=vmem_limit,
        ),
        cost_estimate=cost,
    )(x_flat, w_p, scale_p, bias_p)

    # (N, Ho*Wp, Cout_p) -> (N, Ho, Wo, Cout) -> NCHW
    out = out_flat.reshape(N, Ho, Wp, Cout_p)[:, :, :Wo, :Cout]
    return jnp.transpose(out, (0, 3, 1, 2))


def _reference(x_nchw, w_hwio, bn_gamma, bn_beta, bn_mean, bn_var, eps=1e-5):
    """Pure-JAX reference with the same bf16 input/weight rounding, f32 accumulation."""
    x_nhwc = jnp.transpose(x_nchw, (0, 2, 3, 1)).astype(jnp.bfloat16).astype(jnp.float32)
    w = w_hwio.astype(jnp.bfloat16).astype(jnp.float32)
    y = lax.conv_general_dilated(
        x_nhwc, w, window_strides=(1, 1), padding="SAME",
        dimension_numbers=("NHWC", "HWIO", "NHWC"),
        precision=lax.Precision.HIGHEST)
    scale = bn_gamma / jnp.sqrt(bn_var + eps)
    y = y * scale + (bn_beta - bn_mean * scale)
    y = y * jax.nn.sigmoid(y)
    return jnp.transpose(y, (0, 3, 1, 2))


if __name__ == "__main__":
    # Conv(c1=4, c2=8, k=3, s=1): torch conv weight (c2, c1, k, k); HWIO here.
    N, C1, H, W = 2, 4, 16, 16
    C2, K = 8, 3

    key = jax.random.PRNGKey(0)
    k_x, k_w, k_g, k_b, k_m, k_v = jax.random.split(key, 6)

    x = jax.random.normal(k_x, (N, C1, H, W), dtype=jnp.float32)
    w_hwio = jax.random.normal(k_w, (K, K, C1, C2), dtype=jnp.float32) * (1.0 / (K * K * C1) ** 0.5)
    bn_gamma = 1.0 + 0.1 * jax.random.normal(k_g, (C2,), dtype=jnp.float32)
    bn_beta = 0.1 * jax.random.normal(k_b, (C2,), dtype=jnp.float32)
    bn_mean = 0.1 * jax.random.normal(k_m, (C2,), dtype=jnp.float32)
    bn_var = jnp.abs(jax.random.normal(k_v, (C2,), dtype=jnp.float32)) + 0.5

    out = conv_bn_silu(x, w_hwio, bn_gamma, bn_beta, bn_mean, bn_var)
    out = jax.block_until_ready(out)

    ref = _reference(x, w_hwio, bn_gamma, bn_beta, bn_mean, bn_var)
    assert out.shape == (N, C2, H, W)
    max_err = float(jnp.max(jnp.abs(out - ref)))
    assert jnp.allclose(out, ref, atol=5e-3, rtol=5e-3), f"mismatch vs reference: {max_err}"

    print("KERNEL_OK")
</pallas_src>

<mosaic_0001>
module attributes {stable_mosaic.version = 11 : i64} {
  func.func @kernel(%arg0: i32, %arg1: i32, %arg2: memref<1x432x4xbf16, #tpu.memory_space<vmem>>, %arg3: memref<3x3x4x128xbf16, #tpu.memory_space<vmem>>, %arg4: memref<1x128xf32, #tpu.memory_space<vmem>>, %arg5: memref<1x128xf32, #tpu.memory_space<vmem>>, %arg6: memref<1x192x128xf32, #tpu.memory_space<vmem>>) attributes {dimension_semantics = [#tpu.dimension_semantics<parallel>, #tpu.dimension_semantics<parallel>], iteration_bounds = array<i64: 2, 2>, scalar_prefetch = 0 : i64, scratch_operands = 0 : i64, tpu.core_type = #tpu.core_type<tc>, window_params = [{transform_indices = @transform_0, window_bounds = array<i64: 1, 432, 4>}, {pipeline_mode = #tpu.pipeline_mode<synchronous>, transform_indices = @transform_1, window_bounds = array<i64: 3, 3, 4, 128>}, {pipeline_mode = #tpu.pipeline_mode<synchronous>, transform_indices = @transform_2, window_bounds = array<i64: 1, 128>}, {pipeline_mode = #tpu.pipeline_mode<synchronous>, transform_indices = @transform_3, window_bounds = array<i64: 1, 128>}, {transform_indices = @transform_4, window_bounds = array<i64: 1, 192, 128>}]} {
    %c192_i32 = arith.constant 192 : i32
    %0 = arith.muli %arg1, %c192_i32 : i32
    %cst = arith.constant 0.000000e+00 : f32
    %1 = vector.broadcast %cst : f32 to vector<192x128xf32>
    %c0_i32 = arith.constant 0 : i32
    %2 = arith.addi %0, %c0_i32 : i32
    %3 = tpu.assume_multiple %2, 8 : i32
    %c0 = arith.constant 0 : index
    %4 = arith.index_cast %3 : i32 to index
    %c0_0 = arith.constant 0 : index
    %5 = vector.load %arg2[%c0, %4, %c0_0] : memref<1x432x4xbf16, #tpu.memory_space<vmem>>, vector<1x192x4xbf16>
    %6 = vector.shape_cast %5 : vector<1x192x4xbf16> to vector<192x4xbf16>
    %c0_1 = arith.constant 0 : index
    %c2 = arith.constant 2 : index
    %c0_2 = arith.constant 0 : index
    %c0_3 = arith.constant 0 : index
    %7 = vector.load %arg3[%c0_1, %c2, %c0_2, %c0_3] : memref<3x3x4x128xbf16, #tpu.memory_space<vmem>>, vector<1x1x4x128xbf16>
    %8 = vector.shape_cast %7 : vector<1x1x4x128xbf16> to vector<4x128xbf16>
    %cst_4 = arith.constant dense<0.000000e+00> : vector<192x128xf32>
    %9 = tpu.matmul %6, %8, %cst_4 {dimension_numbers = #tpu.dot_dimension_numbers<[1], [0], [0], [1], [0, 0, 1, 1], [], []>} : vector<192x4xbf16>, vector<4x128xbf16>, vector<192x128xf32> -> vector<192x128xf32>
    %10 = arith.addf %1, %9 : vector<192x128xf32>
    %c24_i32 = arith.constant 24 : i32
    %11 = arith.addi %0, %c24_i32 : i32
    %12 = tpu.assume_multiple %11, 8 : i32
    %c0_5 = arith.constant 0 : index
    %13 = arith.index_cast %12 : i32 to index
    %c0_6 = arith.constant 0 : index
    %14 = vector.load %arg2[%c0_5, %13, %c0_6] : memref<1x432x4xbf16, #tpu.memory_space<vmem>>, vector<1x192x4xbf16>
    %15 = vector.shape_cast %14 : vector<1x192x4xbf16> to vector<192x4xbf16>
    %c1 = arith.constant 1 : index
    %c2_7 = arith.constant 2 : index
    %c0_8 = arith.constant 0 : index
    %c0_9 = arith.constant 0 : index
    %16 = vector.load %arg3[%c1, %c2_7, %c0_8, %c0_9] : memref<3x3x4x128xbf16, #tpu.memory_space<vmem>>, vector<1x1x4x128xbf16>
    %17 = vector.shape_cast %16 : vector<1x1x4x128xbf16> to vector<4x128xbf16>
    %cst_10 = arith.constant dense<0.000000e+00> : vector<192x128xf32>
    %18 = tpu.matmul %15, %17, %cst_10 {dimension_numbers = #tpu.dot_dimension_numbers<[1], [0], [0], [1], [0, 0, 1, 1], [], []>} : vector<192x4xbf16>, vector<4x128xbf16>, vector<192x128xf32> -> vector<192x128xf32>
    %19 = arith.addf %10, %18 : vector<192x128xf32>
    %c48_i32 = arith.constant 48 : i32
    %20 = arith.addi %0, %c48_i32 : i32
    %21 = tpu.assume_multiple %20, 8 : i32
    %c0_11 = arith.constant 0 : index
    %22 = arith.index_cast %21 : i32 to index
    %c0_12 = arith.constant 0 : index
    %23 = vector.load %arg2[%c0_11, %22, %c0_12] : memref<1x432x4xbf16, #tpu.memory_space<vmem>>, vector<1x192x4xbf16>
    %24 = vector.shape_cast %23 : vector<1x192x4xbf16> to vector<192x4xbf16>
    %c2_13 = arith.constant 2 : index
    %c2_14 = arith.constant 2 : index
    %c0_15 = arith.constant 0 : index
    %c0_16 = arith.constant 0 : index
    %25 = vector.load %arg3[%c2_13, %c2_14, %c0_15, %c0_16] : memref<3x3x4x128xbf16, #tpu.memory_space<vmem>>, vector<1x1x4x128xbf16>
    %26 = vector.shape_cast %25 : vector<1x1x4x128xbf16> to vector<4x128xbf16>
    %cst_17 = arith.constant dense<0.000000e+00> : vector<192x128xf32>
    %27 = tpu.matmul %24, %26, %cst_17 {dimension_numbers = #tpu.dot_dimension_numbers<[1], [0], [0], [1], [0, 0, 1, 1], [], []>} : vector<192x4xbf16>, vector<4x128xbf16>, vector<192x128xf32> -> vector<192x128xf32>
    %28 = arith.addf %19, %27 : vector<192x128xf32>
    %c191_i32 = arith.constant 191 : i32
    %29 = tpu.dynamic_rotate %28 by %c191_i32 dim 0 : vector<192x128xf32>, i32 -> vector<192x128xf32>
    %c0_i32_18 = arith.constant 0 : i32
    %30 = arith.addi %0, %c0_i32_18 : i32
    %31 = tpu.assume_multiple %30, 8 : i32
    %c0_19 = arith.constant 0 : index
    %32 = arith.index_cast %31 : i32 to index
    %c0_20 = arith.constant 0 : index
    %33 = vector.load %arg2[%c0_19, %32, %c0_20] : memref<1x432x4xbf16, #tpu.memory_space<vmem>>, vector<1x192x4xbf16>
    %34 = vector.shape_cast %33 : vector<1x192x4xbf16> to vector<192x4xbf16>
    %c0_21 = arith.constant 0 : index
    %c1_22 = arith.constant 1 : index
    %c0_23 = arith.constant 0 : index
    %c0_24 = arith.constant 0 : index
    %35 = vector.load %arg3[%c0_21, %c1_22, %c0_23, %c0_24] : memref<3x3x4x128xbf16, #tpu.memory_space<vmem>>, vector<1x1x4x128xbf16>
    %36 = vector.shape_cast %35 : vector<1x1x4x128xbf16> to vector<4x128xbf16>
    %cst_25 = arith.constant dense<0.000000e+00> : vector<192x128xf32>
    %37 = tpu.matmul %34, %36, %cst_25 {dimension_numbers = #tpu.dot_dimension_numbers<[1], [0], [0], [1], [0, 0, 1, 1], [], []>} : vector<192x4xbf16>, vector<4x128xbf16>, vector<192x128xf32> -> vector<192x128xf32>
    %38 = arith.addf %29, %37 : vector<192x128xf32>
    %c24_i32_26 = arith.constant 24 : i32
    %39 = arith.addi %0, %c24_i32_26 : i32
    %40 = tpu.assume_multiple %39, 8 : i32
    %c0_27 = arith.constant 0 : index
    %41 = arith.index_cast %40 : i32 to index
    %c0_28 = arith.constant 0 : index
    %42 = vector.load %arg2[%c0_27, %41, %c0_28] : memref<1x432x4xbf16, #tpu.memory_space<vmem>>, vector<1x192x4xbf16>
    %43 = vector.shape_cast %42 : vector<1x192x4xbf16> to vector<192x4xbf16>
    %c1_29 = arith.constant 1 : index
    %c1_30 = arith.constant 1 : index
    %c0_31 = arith.constant 0 : index
    %c0_32 = arith.constant 0 : index
    %44 = vector.load %arg3[%c1_29, %c1_30, %c0_31, %c0_32] : memref<3x3x4x128xbf16, #tpu.memory_space<vmem>>, vector<1x1x4x128xbf16>
    %45 = vector.shape_cast %44 : vector<1x1x4x128xbf16> to vector<4x128xbf16>
    %cst_33 = arith.constant dense<0.000000e+00> : vector<192x128xf32>
    %46 = tpu.matmul %43, %45, %cst_33 {dimension_numbers = #tpu.dot_dimension_numbers<[1], [0], [0], [1], [0, 0, 1, 1], [], []>} : vector<192x4xbf16>, vector<4x128xbf16>, vector<192x128xf32> -> vector<192x128xf32>
    %47 = arith.addf %38, %46 : vector<192x128xf32>
    %c48_i32_34 = arith.constant 48 : i32
    %48 = arith.addi %0, %c48_i32_34 : i32
    %49 = tpu.assume_multiple %48, 8 : i32
    %c0_35 = arith.constant 0 : index
    %50 = arith.index_cast %49 : i32 to index
    %c0_36 = arith.constant 0 : index
    %51 = vector.load %arg2[%c0_35, %50, %c0_36] : memref<1x432x4xbf16, #tpu.memory_space<vmem>>, vector<1x192x4xbf16>
    %52 = vector.shape_cast %51 : vector<1x192x4xbf16> to vector<192x4xbf16>
    %c2_37 = arith.constant 2 : index
    %c1_38 = arith.constant 1 : index
    %c0_39 = arith.constant 0 : index
    %c0_40 = arith.constant 0 : index
    %53 = vector.load %arg3[%c2_37, %c1_38, %c0_39, %c0_40] : memref<3x3x4x128xbf16, #tpu.memory_space<vmem>>, vector<1x1x4x128xbf16>
    %54 = vector.shape_cast %53 : vector<1x1x4x128xbf16> to vector<4x128xbf16>
    %cst_41 = arith.constant dense<0.000000e+00> : vector<192x128xf32>
    %55 = tpu.matmul %52, %54, %cst_41 {dimension_numbers = #tpu.dot_dimension_numbers<[1], [0], [0], [1], [0, 0, 1, 1], [], []>} : vector<192x4xbf16>, vector<4x128xbf16>, vector<192x128xf32> -> vector<192x128xf32>
    %56 = arith.addf %47, %55 : vector<192x128xf32>
    %c191_i32_42 = arith.constant 191 : i32
    %57 = tpu.dynamic_rotate %56 by %c191_i32_42 dim 0 : vector<192x128xf32>, i32 -> vector<192x128xf32>
    %c0_i32_43 = arith.constant 0 : i32
    %58 = arith.addi %0, %c0_i32_43 : i32
    %59 = tpu.assume_multiple %58, 8 : i32
    %c0_44 = arith.constant 0 : index
    %60 = arith.index_cast %59 : i32 to index
    %c0_45 = arith.constant 0 : index
    %61 = vector.load %arg2[%c0_44, %60, %c0_45] : memref<1x432x4xbf16, #tpu.memory_space<vmem>>, vector<1x192x4xbf16>
    %62 = vector.shape_cast %61 : vector<1x192x4xbf16> to vector<192x4xbf16>
    %c0_46 = arith.constant 0 : index
    %c0_47 = arith.constant 0 : index
    %c0_48 = arith.constant 0 : index
    %c0_49 = arith.constant 0 : index
    %63 = vector.load %arg3[%c0_46, %c0_47, %c0_48, %c0_49] : memref<3x3x4x128xbf16, #tpu.memory_space<vmem>>, vector<1x1x4x128xbf16>
    %64 = vector.shape_cast %63 : vector<1x1x4x128xbf16> to vector<4x128xbf16>
    %cst_50 = arith.constant dense<0.000000e+00> : vector<192x128xf32>
    %65 = tpu.matmul %62, %64, %cst_50 {dimension_numbers = #tpu.dot_dimension_numbers<[1], [0], [0], [1], [0, 0, 1, 1], [], []>} : vector<192x4xbf16>, vector<4x128xbf16>, vector<192x128xf32> -> vector<192x128xf32>
    %66 = arith.addf %57, %65 : vector<192x128xf32>
    %c24_i32_51 = arith.constant 24 : i32
    %67 = arith.addi %0, %c24_i32_51 : i32
    %68 = tpu.assume_multiple %67, 8 : i32
    %c0_52 = arith.constant 0 : index
    %69 = arith.index_cast %68 : i32 to index
    %c0_53 = arith.constant 0 : index
    %70 = vector.load %arg2[%c0_52, %69, %c0_53] : memref<1x432x4xbf16, #tpu.memory_space<vmem>>, vector<1x192x4xbf16>
    %71 = vector.shape_cast %70 : vector<1x192x4xbf16> to vector<192x4xbf16>
    %c1_54 = arith.constant 1 : index
    %c0_55 = arith.constant 0 : index
    %c0_56 = arith.constant 0 : index
    %c0_57 = arith.constant 0 : index
    %72 = vector.load %arg3[%c1_54, %c0_55, %c0_56, %c0_57] : memref<3x3x4x128xbf16, #tpu.memory_space<vmem>>, vector<1x1x4x128xbf16>
    %73 = vector.shape_cast %72 : vector<1x1x4x128xbf16> to vector<4x128xbf16>
    %cst_58 = arith.constant dense<0.000000e+00> : vector<192x128xf32>
    %74 = tpu.matmul %71, %73, %cst_58 {dimension_numbers = #tpu.dot_dimension_numbers<[1], [0], [0], [1], [0, 0, 1, 1], [], []>} : vector<192x4xbf16>, vector<4x128xbf16>, vector<192x128xf32> -> vector<192x128xf32>
    %75 = arith.addf %66, %74 : vector<192x128xf32>
    %c48_i32_59 = arith.constant 48 : i32
    %76 = arith.addi %0, %c48_i32_59 : i32
    %77 = tpu.assume_multiple %76, 8 : i32
    %c0_60 = arith.constant 0 : index
    %78 = arith.index_cast %77 : i32 to index
    %c0_61 = arith.constant 0 : index
    %79 = vector.load %arg2[%c0_60, %78, %c0_61] : memref<1x432x4xbf16, #tpu.memory_space<vmem>>, vector<1x192x4xbf16>
    %80 = vector.shape_cast %79 : vector<1x192x4xbf16> to vector<192x4xbf16>
    %c2_62 = arith.constant 2 : index
    %c0_63 = arith.constant 0 : index
    %c0_64 = arith.constant 0 : index
    %c0_65 = arith.constant 0 : index
    %81 = vector.load %arg3[%c2_62, %c0_63, %c0_64, %c0_65] : memref<3x3x4x128xbf16, #tpu.memory_space<vmem>>, vector<1x1x4x128xbf16>
    %82 = vector.shape_cast %81 : vector<1x1x4x128xbf16> to vector<4x128xbf16>
    %cst_66 = arith.constant dense<0.000000e+00> : vector<192x128xf32>
    %83 = tpu.matmul %80, %82, %cst_66 {dimension_numbers = #tpu.dot_dimension_numbers<[1], [0], [0], [1], [0, 0, 1, 1], [], []>} : vector<192x4xbf16>, vector<4x128xbf16>, vector<192x128xf32> -> vector<192x128xf32>
    %84 = arith.addf %75, %83 : vector<192x128xf32>
    %c0_67 = arith.constant 0 : index
    %c0_68 = arith.constant 0 : index
    %85 = vector.load %arg4[%c0_67, %c0_68] : memref<1x128xf32, #tpu.memory_space<vmem>>, vector<1x128xf32>
    %86 = vector.broadcast %85 : vector<1x128xf32> to vector<192x128xf32>
    %87 = arith.mulf %84, %86 : vector<192x128xf32>
    %c0_69 = arith.constant 0 : index
    %c0_70 = arith.constant 0 : index
    %88 = vector.load %arg5[%c0_69, %c0_70] : memref<1x128xf32, #tpu.memory_space<vmem>>, vector<1x128xf32>
    %89 = vector.broadcast %88 : vector<1x128xf32> to vector<192x128xf32>
    %90 = arith.addf %87, %89 : vector<192x128xf32>
    %91 = arith.negf %90 : vector<192x128xf32>
    %92 = math.exp %91 : vector<192x128xf32>
    %cst_71 = arith.constant 1.000000e+00 : f32
    %93 = vector.broadcast %cst_71 : f32 to vector<192x128xf32>
    %94 = arith.addf %93, %92 : vector<192x128xf32>
    %95 = arith.divf %93, %94 : vector<192x128xf32>
    %96 = arith.mulf %90, %95 : vector<192x128xf32>
    %c0_72 = arith.constant 0 : index
    %c0_73 = arith.constant 0 : index
    %c0_74 = arith.constant 0 : index
    %97 = vector.load %arg6[%c0_72, %c0_73, %c0_74] : memref<1x192x128xf32, #tpu.memory_space<vmem>>, vector<1x192x128xf32>
    %98 = vector.shape_cast %97 : vector<1x192x128xf32> to vector<192x128xf32>
    %99 = vector.shape_cast %96 : vector<192x128xf32> to vector<1x192x128xf32>
    tpu.vector_store %arg6[%c0_72, %c0_73, %c0_74], %99 {strides = array<i32>} : memref<1x192x128xf32, #tpu.memory_space<vmem>>, vector<1x192x128xf32>,
    return
  }
  func.func @transform_0(%arg0: i32, %arg1: i32) -> (i32, i32, i32) {
    %c0_i32 = arith.constant 0 : i32
    %c0_i32_0 = arith.constant 0 : i32
    %c0_i32_1 = arith.constant 0 : i32
    return %arg0, %c0_i32, %c0_i32_0 : i32, i32, i32
  }
  func.func @transform_1(%arg0: i32, %arg1: i32) -> (i32, i32, i32, i32) {
    %c0_i32 = arith.constant 0 : i32
    %c0_i32_0 = arith.constant 0 : i32
    %c0_i32_1 = arith.constant 0 : i32
    %c0_i32_2 = arith.constant 0 : i32
    %c0_i32_3 = arith.constant 0 : i32
    return %c0_i32, %c0_i32_0, %c0_i32_1, %c0_i32_2 : i32, i32, i32, i32
  }
  func.func @transform_2(%arg0: i32, %arg1: i32) -> (i32, i32) {
    %c0_i32 = arith.constant 0 : i32
    %c0_i32_0 = arith.constant 0 : i32
    %c0_i32_1 = arith.constant 0 : i32
    return %c0_i32, %c0_i32_0 : i32, i32
  }
  func.func @transform_3(%arg0: i32, %arg1: i32) -> (i32, i32) {
    %c0_i32 = arith.constant 0 : i32
    %c0_i32_0 = arith.constant 0 : i32
    %c0_i32_1 = arith.constant 0 : i32
    return %c0_i32, %c0_i32_0 : i32, i32
  }
  func.func @transform_4(%arg0: i32, %arg1: i32) -> (i32, i32, i32) {
    %c0_i32 = arith.constant 0 : i32
    %c0_i32_0 = arith.constant 0 : i32
    return %arg0, %arg1, %c0_i32 : i32, i32, i32
  }
}

</mosaic_0001>

<llo_original>
// kernel: tpu_custom_call.1
$region0: #{tpu_custom_call.1}
  #allocation0 [shape = 'u32[]', space=smem, size = 0x4, offset = 0x4, fixed_abs, tag = 'smem constant byte address 0x4 - core index']
  #allocation1 [shape = 'u32[144,128]{1,0:T(1,128)}', space=vmem, size = 0x12000, scoped, tag = 'internal scratch']
  %s0 = inlined_call_operand.vmem [shape: bf16[2,432,4], index: 0, kind: input, shape index: {}]
  %s1 = inlined_call_operand.vmem [shape: bf16[3,3,4,128], index: 1, kind: input, shape index: {}]
  %s2 = inlined_call_operand.vmem [shape: f32[1,128], index: 2, kind: input, shape index: {}]
  %s3 = inlined_call_operand.vmem [shape: f32[1,128], index: 3, kind: input, shape index: {}]
  %s4 = inlined_call_operand.hbm [shape: f32[2,384,128], index: 4, kind: output, shape index: {}]
  %s5 = sld [smem:[#allocation0]]
  $region49: #{tpu_custom_call.1} parent=0
    _
  %s7 = ssub.s32 1, %s5
  %s8 = scalar_select 0, %s7, %s5
  $region1: #{tpu_custom_call.1} parent=0
    #allocation2 [shape = 'u8[196608]{0}', space=vmem, size = 0x30000, scoped, tag = 'output window, operand 0']
    #allocation3 [shape = 's32[2]{0}', space=sflag, size = 0x8, scoped, tag = 'scoped memory for tpu_custom_call.1']
    %9 = vsyncpa [#allocation3], 0
    %s10 = scalar_lea.sflag [#allocation3], 1
    %11 = vsyncpa %s10, 0
    loop: start=0, step=1, limit=6
    $region2: #{tpu_custom_call.1} parent=1 // loop_pre_header
      _
    $region3: #{tpu_custom_call.1} parent=1 // loop_header
      %s13 = sphi 0, %s17
      %p14 = scmp.ge.s32.totalorder %s13, 6
      %s20 = sphi 0, %s32
      %s21 = sphi 0, %s28
      %s22 = sphi 0, %s20
      %s23 = sphi 0, %s21
      %s24 = sphi 0, %s22
      %s25 = sphi 0, %s23
      %s35 = sphi 0, %s37
      %s38 = sphi 0, %s35
      %s39 = sphi 0, %s38
      %s55 = sphi 0, %s39
      %s59 = sphi 0, %s59
      %s61 = sphi 0, %s59
      %s62 = sphi 0, %s61
      %s76 = sphi 0, %s62
      %s80 = sphi 0, %s80
      %s82 = sphi 0, %s80
      %s83 = sphi 0, %s82
      %s97 = sphi 0, %s83
      %s101 = sphi 0, %s101
      %s103 = sphi 0, %s101
      %s104 = sphi 0, %s103
      %s118 = sphi 0, %s104
      %s126 = sphi 0, %s128
      %s129 = sphi 0, %s126
      %s130 = sphi 0, %s129
      %s146 = sphi 0, %s130
    $region4: #{tpu_custom_call.1} parent=1 // loop_header_branch
      %16 = sbr.rel (%p14) target = $region8
    $region5: #{tpu_custom_call.1} parent=1 // loop_body
      %s18 = ssub.s32 %s13, 1
      %s19 = ssub.s32 %s13, 2
      %s26 = sadd.s32 1, %s21
      %p27 = scmp.ge.s32.totalorder %s26, 2
      %s28 = scalar_select %p27, 0, %s26
      %s29 = sadd.s32 1, %s20
      %s30 = scalar_select %p27, %s29, %s20
      %p31 = scmp.ge.s32.totalorder %s30, 2
      %s32 = scalar_select %p31, 0, %s30
      %s33 = ssub.s32 %s20, %s32
      %p34 = scmp.eq.s32.totalorder %s33, 0
      %s36 = sadd.s32 %s35, 1
      %s37 = scalar_select %p34, %s35, %s36
      %p40 = pneg %p34
      %p41 = scmp.eq.s32.totalorder %s13, 3
      %p42 = por %p40, %p41
      %p43 = scmp.ne.s32.totalorder %s35, %s38
      %p44 = scmp.eq.s32.totalorder %s13, 0
      %p45 = por %p43, %p44
      %p46 = scmp.ne.s32.totalorder %s35, %s38
      %p47 = scmp.eq.s32.totalorder %s18, 3
      %p48 = por %p46, %p47
      %p49 = scmp.ne.s32.totalorder %s38, %s39
      %p50 = scmp.eq.s32.totalorder %s18, 0
      %p51 = por %p49, %p50
      %p52 = scmp.ne.s32.totalorder %s38, %s39
      %p53 = scmp.eq.s32.totalorder %s19, 3
      %p54 = por %p52, %p53
      %p56 = scmp.ne.s32.totalorder %s39, %s55
      %p57 = scmp.eq.s32.totalorder %s19, 0
      %p58 = por %p56, %p57
      %s60 = sadd.s32 %s59, 1
      %p63 = scmp.eq.s32.totalorder %s13, 3
      %p64 = scmp.ne.s32.totalorder %s59, %s61
      %p65 = scmp.eq.s32.totalorder %s13, 0
      %p66 = por %p64, %p65
      %p67 = scmp.ne.s32.totalorder %s59, %s61
      %p68 = scmp.eq.s32.totalorder %s18, 3
      %p69 = por %p67, %p68
      %p70 = scmp.ne.s32.totalorder %s61, %s62
      %p71 = scmp.eq.s32.totalorder %s18, 0
      %p72 = por %p70, %p71
      %p73 = scmp.ne.s32.totalorder %s61, %s62
      %p74 = scmp.eq.s32.totalorder %s19, 3
      %p75 = por %p73, %p74
      %p77 = scmp.ne.s32.totalorder %s62, %s76
      %p78 = scmp.eq.s32.totalorder %s19, 0
      %p79 = por %p77, %p78
      %s81 = sadd.s32 %s80, 1
      %p84 = scmp.eq.s32.totalorder %s13, 3
      %p85 = scmp.ne.s32.totalorder %s80, %s82
      %p86 = scmp.eq.s32.totalorder %s13, 0
      %p87 = por %p85, %p86
      %p88 = scmp.ne.s32.totalorder %s80, %s82
      %p89 = scmp.eq.s32.totalorder %s18, 3
      %p90 = por %p88, %p89
      %p91 = scmp.ne.s32.totalorder %s82, %s83
      %p92 = scmp.eq.s32.totalorder %s18, 0
      %p93 = por %p91, %p92
      %p94 = scmp.ne.s32.totalorder %s82, %s83
      %p95 = scmp.eq.s32.totalorder %s19, 3
      %p96 = por %p94, %p95
      %p98 = scmp.ne.s32.totalorder %s83, %s97
      %p99 = scmp.eq.s32.totalorder %s19, 0
      %p100 = por %p98, %p99
      %s102 = sadd.s32 %s101, 1
      %p105 = scmp.eq.s32.totalorder %s13, 3
      %p106 = scmp.ne.s32.totalorder %s101, %s103
      %p107 = scmp.eq.s32.totalorder %s13, 0
      %p108 = por %p106, %p107
      %p109 = scmp.ne.s32.totalorder %s101, %s103
      %p110 = scmp.eq.s32.totalorder %s18, 3
      %p111 = por %p109, %p110
      %p112 = scmp.ne.s32.totalorder %s103, %s104
      %p113 = scmp.eq.s32.totalorder %s18, 0
      %p114 = por %p112, %p113
      %p115 = scmp.ne.s32.totalorder %s103, %s104
      %p116 = scmp.eq.s32.totalorder %s19, 3
      %p117 = por %p115, %p116
      %p119 = scmp.ne.s32.totalorder %s104, %s118
      %p120 = scmp.eq.s32.totalorder %s19, 0
      %p121 = por %p119, %p120
      %s122 = ssub.s32 %s20, %s32
      %s123 = ssub.s32 %s21, %s28
      %s124 = sor.u32 %s122, %s123
      %p125 = scmp.eq.s32.totalorder %s124, 0
      %s127 = sadd.s32 %s126, 1
      %s128 = scalar_select %p125, %s126, %s127
      %p131 = pneg %p125
      %p132 = scmp.eq.s32.totalorder %s13, 3
      %p133 = por %p131, %p132
      %p134 = scmp.ne.s32.totalorder %s126, %s129
      %p135 = scmp.eq.s32.totalorder %s13, 0
      %p136 = por %p134, %p135
      %p137 = scmp.ne.s32.totalorder %s126, %s129
      %p138 = scmp.eq.s32.totalorder %s18, 3
      %p139 = por %p137, %p138
      %p140 = scmp.ne.s32.totalorder %s129, %s130
      %p141 = scmp.eq.s32.totalorder %s18, 0
      %p142 = por %p140, %p141
      %p143 = scmp.ne.s32.totalorder %s129, %s130
      %p144 = scmp.eq.s32.totalorder %s19, 3
      %p145 = por %p143, %p144
      %p147 = scmp.ne.s32.totalorder %s130, %s146
      %p148 = scmp.eq.s32.totalorder %s19, 0
      %p149 = por %p147, %p148
      %p150 = scmp.le.s32.totalorder 1, %s13
      %p151 = scmp.lt.s32.totalorder %s13, 5
      %p152 = pnand %p150, %p151
      %p153 = pneg %p152
      // Predicated region
      $region9: #{tpu_custom_call.1} parent=5 // pred_check
        _
      $region10: #{tpu_custom_call.1} parent=5 // pred_check_branch
        %155 = sbr.rel (%p152) target = $region12
      $region11: #{tpu_custom_call.1} parent=5 // pred_region
        %s156 = ssub.s32 %s13, 1
        // Predicated region
        $region13: #{tpu_custom_call.1} parent=11 // pred_check
          %p157 = pneg %p72
        $region14: #{tpu_custom_call.1} parent=11 // pred_check_branch
          %159 = sbr.rel (%p157) target = $region16
        $region15: #{tpu_custom_call.1} parent=11 // pred_region
          _
        $region16: #{tpu_custom_call.1} parent=11 // pred_fallthru
          _
        // Predicated region
        $region17: #{tpu_custom_call.1} parent=11 // pred_check
          %p160 = pneg %p93
        $region18: #{tpu_custom_call.1} parent=11 // pred_check_branch
          %162 = sbr.rel (%p160) target = $region20
        $region19: #{tpu_custom_call.1} parent=11 // pred_region
          _
        $region20: #{tpu_custom_call.1} parent=11 // pred_fallthru
          _
        // Predicated region
        $region21: #{tpu_custom_call.1} parent=11 // pred_check
          %p163 = pneg %p114
        $region22: #{tpu_custom_call.1} parent=11 // pred_check_branch
          %165 = sbr.rel (%p163) target = $region24
        $region23: #{tpu_custom_call.1} parent=11 // pred_region
          _
        $region24: #{tpu_custom_call.1} parent=11 // pred_fallthru
          _
      $region12: #{tpu_custom_call.1} parent=5 // pred_fallthru
        _
      %p166 = scmp.lt.s32.totalorder %s13, 4
      // Predicated region
      $region25: #{tpu_custom_call.1} parent=5 // pred_check
        %p167 = pneg %p166
      $region26: #{tpu_custom_call.1} parent=5 // pred_check_branch
        %169 = sbr.rel (%p167) target = $region28
      $region27: #{tpu_custom_call.1} parent=5 // pred_region
        // Predicated region
        $region29: #{tpu_custom_call.1} parent=27 // pred_check
          %p170 = pneg %p45
        $region30: #{tpu_custom_call.1} parent=27 // pred_check_branch
          %172 = sbr.rel (%p170) target = $region32
        $region31: #{tpu_custom_call.1} parent=27 // pred_region
          %p173 = scmp.lt.s32.totalorder %s20, 1
          %s174 = scalar_select %p173, %s20, 1
          %s175 = smul.addr %s174, 54
          %s176 = smul.addr %s175, 4
          %s177 = scalar_lea.vmem %s0, %s176
        $region32: #{tpu_custom_call.1} parent=27 // pred_fallthru
          _
      $region28: #{tpu_custom_call.1} parent=5 // pred_fallthru
        _
      %p178 = scmp.le.s32.totalorder 1, %s13
      %p179 = scmp.lt.s32.totalorder %s13, 5
      %p180 = pnand %p178, %p179
      %p181 = pneg %p180
      // Predicated region
      $region33: #{tpu_custom_call.1} parent=5 // pred_check
        _
      $region34: #{tpu_custom_call.1} parent=5 // pred_check_branch
        %183 = sbr.rel (%p180) target = $region36
      $region35: #{tpu_custom_call.1} parent=5 // pred_region
        %s184 = ssub.s32 %s13, 1
        %p185 = scmp.lt.s32.totalorder %s22, 1
        %s186 = scalar_select %p185, %s22, 1
        %s187 = smul.addr %s186, 54
        %s188 = smul.addr %s187, 4
        %s189 = scalar_lea.vmem %s0, %s188
        %p190 = pneg %p51
        %p191 = pneg %p48
        %p192 = pneg %p72
        %p193 = pneg %p69
        %p194 = pneg %p93
        %p195 = pneg %p90
        %p196 = pneg %p114
        %p197 = pneg %p111
        %p198 = pneg %p142
        %p199 = pneg %p139
        %s200 = sand.u32 %s129, 1
        %s201 = scalar_lea.sflag [#allocation3], %s200
        %s202 = sand.u32 %s129, 1
        %s203 = smul.addr %s202, 192
        %s204 = scalar_lea.vmem [#allocation2], %s203
        %p205 = scmp.lt.s32.totalorder %s22, 1
        %s206 = scalar_select %p205, %s22, 1
        %s207 = smul.addr %s206, 54
        %s208 = smul.addr %s207, 4
        %s209 = scalar_lea.vmem %s0, %s208
        %s210 = smul.u32 24, %s23
        %s212 = smul.u32 %s23, 192
        %s213 = sshra.s32 %s212, 3
        %s214 = sand.u32 %s212, 7
        %s215 = smul.addr %s213, 4
        %s216 = scalar_lea.vmem %s209, %s215
        %v217 = vld [vmem:[%s216] sm:$0xf]
        %v218 = vld [vmem:[%s216 + $0x4] sm:$0xf]
        %v219 = vld [vmem:[%s216 + $0x8] sm:$0xf]
        %v220 = vld [vmem:[%s216 + $0xc] sm:$0xf]
        %v221 = vld [vmem:[%s216 + $0x10] sm:$0xf]
        %v222 = vld [vmem:[%s216 + $0x14] sm:$0xf]
        %v223 = vld [vmem:[%s216 + $0x18] sm:$0xf]
        %v224 = vld [vmem:[%s216 + $0x1c] sm:$0xf]
        %v225 = vld [vmem:[%s216 + $0x20] sm:$0xf]
        %v226 = vld [vmem:[%s216 + $0x24] sm:$0xf]
        %v227 = vld [vmem:[%s216 + $0x28] sm:$0xf]
        %v228 = vld [vmem:[%s216 + $0x2c] sm:$0xf]
        %v229 = vld [vmem:[%s216 + $0x30] sm:$0xf]
        %v230 = vld [vmem:[%s216 + $0x34] sm:$0xf]
        %v231 = vld [vmem:[%s216 + $0x38] sm:$0xf]
        %v232 = vld [vmem:[%s216 + $0x3c] sm:$0xf]
        %v233 = vld [vmem:[%s216 + $0x40] sm:$0xf]
        %v234 = vld [vmem:[%s216 + $0x44] sm:$0xf]
        %v235 = vld [vmem:[%s216 + $0x48] sm:$0xf]
        %v236 = vld [vmem:[%s216 + $0x4c] sm:$0xf]
        %v237 = vld [vmem:[%s216 + $0x50] sm:$0xf]
        %v238 = vld [vmem:[%s216 + $0x54] sm:$0xf]
        %v239 = vld [vmem:[%s216 + $0x58] sm:$0xf]
        %v240 = vld [vmem:[%s216 + $0x5c] sm:$0xf]
        %s241 = scalar_lea.vmem %s1, 4
        %v242 = vld [vmem:[%s241] sm:$0x3]
        %s243 = sadd.s32 %s212, 24
        %s244 = sshra.s32 %s243, 3
        %s245 = sand.u32 %s243, 7
        %s246 = smul.addr %s244, 4
        %s247 = scalar_lea.vmem %s209, %s246
        %v248 = vld [vmem:[%s247] sm:$0xf]
        %v249 = vld [vmem:[%s247 + $0x4] sm:$0xf]
        %v250 = vld [vmem:[%s247 + $0x8] sm:$0xf]
        %v251 = vld [vmem:[%s247 + $0xc] sm:$0xf]
        %v252 = vld [vmem:[%s247 + $0x10] sm:$0xf]
        %v253 = vld [vmem:[%s247 + $0x14] sm:$0xf]
        %v254 = vld [vmem:[%s247 + $0x18] sm:$0xf]
        %v255 = vld [vmem:[%s247 + $0x1c] sm:$0xf]
        %v256 = vld [vmem:[%s247 + $0x20] sm:$0xf]
        %v257 = vld [vmem:[%s247 + $0x24] sm:$0xf]
        %v258 = vld [vmem:[%s247 + $0x28] sm:$0xf]
        %v259 = vld [vmem:[%s247 + $0x2c] sm:$0xf]
        %v260 = vld [vmem:[%s247 + $0x30] sm:$0xf]
        %v261 = vld [vmem:[%s247 + $0x34] sm:$0xf]
        %v262 = vld [vmem:[%s247 + $0x38] sm:$0xf]
        %v263 = vld [vmem:[%s247 + $0x3c] sm:$0xf]
        %v264 = vld [vmem:[%s247 + $0x40] sm:$0xf]
        %v265 = vld [vmem:[%s247 + $0x44] sm:$0xf]
        %v266 = vld [vmem:[%s247 + $0x48] sm:$0xf]
        %v267 = vld [vmem:[%s247 + $0x4c] sm:$0xf]
        %v268 = vld [vmem:[%s247 + $0x50] sm:$0xf]
        %v269 = vld [vmem:[%s247 + $0x54] sm:$0xf]
        %v270 = vld [vmem:[%s247 + $0x58] sm:$0xf]
        %v271 = vld [vmem:[%s247 + $0x5c] sm:$0xf]
        %s272 = scalar_lea.vmem %s1, 10
        %v273 = vld [vmem:[%s272] sm:$0x3]
        %v298 = vunpack.c.l.b16 %v248
        %v299 = vunpack.c.l.b16 %v249
        %v300 = vunpack.c.l.b16 %v250
        %v301 = vunpack.c.l.b16 %v251
        %v302 = vunpack.c.l.b16 %v252
        %v303 = vunpack.c.l.b16 %v253
        %v304 = vunpack.c.l.b16 %v254
        %v305 = vunpack.c.l.b16 %v255
        %v306 = vunpack.c.l.b16 %v256
        %v307 = vunpack.c.l.b16 %v257
        %v308 = vunpack.c.l.b16 %v258
        %v309 = vunpack.c.l.b16 %v259
        %v310 = vunpack.c.l.b16 %v260
        %v311 = vunpack.c.l.b16 %v261
        %v312 = vunpack.c.l.b16 %v262
        %v313 = vunpack.c.l.b16 %v263
        %v314 = vunpack.c.l.b16 %v264
        %v315 = vunpack.c.l.b16 %v265
        %v316 = vunpack.c.l.b16 %v266
        %v317 = vunpack.c.l.b16 %v267
        %v318 = vunpack.c.l.b16 %v268
        %v319 = vunpack.c.l.b16 %v269
        %v320 = vunpack.c.l.b16 %v270
        %v321 = vunpack.c.l.b16 %v271
        %v322 = vpack.c.b16 %v299, %v298
        %v323 = vpack.c.b16 %v301, %v300
        %v324 = vpack.c.b16 %v303, %v302
        %v325 = vpack.c.b16 %v305, %v304
        %v326 = vpack.c.b16 %v307, %v306
        %v327 = vpack.c.b16 %v309, %v308
        %v328 = vpack.c.b16 %v311, %v310
        %v329 = vpack.c.b16 %v313, %v312
        %v330 = vpack.c.b16 %v315, %v314
        %v331 = vpack.c.b16 %v317, %v316
        %v332 = vpack.c.b16 %v319, %v318
        %v333 = vpack.c.b16 %v321, %v320
        %vm334 = vcmask 31744
        %v336 = vsel %vm334, %v322, 0
        %v339 = vsel %vm334, %v323, 0
        %v342 = vsel %vm334, %v324, 0
        %v345 = vsel %vm334, %v325, 0
        %v348 = vsel %vm334, %v326, 0
        %v351 = vsel %vm334, %v327, 0
        %v354 = vsel %vm334, %v328, 0
        %v357 = vsel %vm334, %v329, 0
        %v360 = vsel %vm334, %v330, 0
        %v363 = vsel %vm334, %v331, 0
        %v366 = vsel %vm334, %v332, 0
        %v369 = vsel %vm334, %v333, 0
        %vm371 = vcmask 1041408
        %v373 = vsel %vm371, %v273, 0
        %375 = vmatprep.subr.bf16.mxu0 0
        %376 = vmatpush1.bf16.msra.mxu0 %v373
        %377 = vmatprep.subr.bf16.mxu0 0
        %378 = vmatpush1.bf16.msra.mxu0 0
        %379 = vmatprep.subr.bf16.mxu0 0
        %380 = vmatpush1.bf16.msra.mxu0 0
        %381 = vmatprep.subr.bf16.mxu0 0
        %382 = vmatpush1.bf16.msra.mxu0 0
        %383 = vmatprep.subr.bf16.mxu0 0
        %384 = vmatpush1.bf16.msra.mxu0 0
        %385 = vmatprep.subr.bf16.mxu0 0
        %386 = vmatpush1.bf16.msra.mxu0 0
        %387 = vmatprep.subr.bf16.mxu0 0
        %388 = vmatpush1.bf16.msra.mxu0 0
        %389 = vmatprep.subr.bf16.mxu0 0
        %390 = vmatpush1.bf16.msra.mxu0 0
        %391 = vmatprep.subr.bf16.mxu0 0
        %392 = vmatpush1.bf16.msra.mxu0 0
        %393 = vmatprep.subr.bf16.mxu0 0
        %394 = vmatpush1.bf16.msra.mxu0 0
        %395 = vmatprep.subr.bf16.mxu0 0
        %396 = vmatpush1.bf16.msra.mxu0 0
        %397 = vmatprep.subr.bf16.mxu0 0
        %398 = vmatpush1.bf16.msra.mxu0 0
        %399 = vmatprep.subr.bf16.mxu0 0
        %400 = vmatpush1.bf16.msra.mxu0 0
        %401 = vmatprep.subr.bf16.mxu0 0
        %402 = vmatpush1.bf16.msra.mxu0 0
        %403 = vmatprep.subr.bf16.mxu0 0
        %404 = vmatpush1.bf16.msra.mxu0 0
        %405 = vmatprep.subr.bf16.mxu0 0
        %406 = vmatpush1.bf16.msra.mxu0 0
        %407 = vmatprep.mubr.bf16.mxu0 0
        %408 = vmatmul.mubr.bf16.gmra.mrb[0].mxu0 %v336
        %v409 = vpop.f32.mrb[0].mxu0
        %v410 = vadd.f32 0.0, %v409
        %v411 = vpop.f32.mrb[0].mxu0
        %v412 = vpop.f32.mrb[0].mxu0
        %v413 = vadd.f32 0.0, %v412
        %v414 = vpop.f32.mrb[0].mxu0
        %415 = vmatprep.mubr.bf16.mxu0 0
        %416 = vmatmul.mubr.bf16.gmra.mrb[0].mxu0 %v339
        %v417 = vpop.f32.mrb[0].mxu0
        %v418 = vadd.f32 0.0, %v417
        %v419 = vpop.f32.mrb[0].mxu0
        %v420 = vpop.f32.mrb[0].mxu0
        %v421 = vadd.f32 0.0, %v420
        %v422 = vpop.f32.mrb[0].mxu0
        %423 = vmatprep.mubr.bf16.mxu0 0
        %424 = vmatmul.mubr.bf16.gmra.mrb[0].mxu0 %v342
        %v425 = vpop.f32.mrb[0].mxu0
        %v426 = vadd.f32 0.0, %v425
        %v427 = vpop.f32.mrb[0].mxu0
        %v428 = vpop.f32.mrb[0].mxu0
        %v429 = vadd.f32 0.0, %v428
        %v430 = vpop.f32.mrb[0].mxu0
        %431 = vmatprep.mubr.bf16.mxu0 0
        %432 = vmatmul.mubr.bf16.gmra.mrb[0].mxu0 %v345
        %v433 = vpop.f32.mrb[0].mxu0
        %v434 = vadd.f32 0.0, %v433
        %v435 = vpop.f32.mrb[0].mxu0
        %v436 = vpop.f32.mrb[0].mxu0
        %v437 = vadd.f32 0.0, %v436
        %v438 = vpop.f32.mrb[0].mxu0
        %439 = vmatprep.mubr.bf16.mxu0 0
        %440 = vmatmul.mubr.bf16.gmra.mrb[0].mxu0 %v348
        %v441 = vpop.f32.mrb[0].mxu0
        %v442 = vadd.f32 0.0, %v441
        %v443 = vpop.f32.mrb[0].mxu0
        %v444 = vpop.f32.mrb[0].mxu0
        %v445 = vadd.f32 0.0, %v444
        %v446 = vpop.f32.mrb[0].mxu0
        %447 = vmatprep.mubr.bf16.mxu0 0
        %448 = vmatmul.mubr.bf16.gmra.mrb[0].mxu0 %v351
        %v449 = vpop.f32.mrb[0].mxu0
        %v450 = vadd.f32 0.0, %v449
        %v451 = vpop.f32.mrb[0].mxu0
        %v452 = vpop.f32.mrb[0].mxu0
        %v453 = vadd.f32 0.0, %v452
        %v454 = vpop.f32.mrb[0].mxu0
        %455 = vmatprep.mubr.bf16.mxu0 0
        %456 = vmatmul.mubr.bf16.gmra.mrb[0].mxu0 %v354
        %v457 = vpop.f32.mrb[0].mxu0
        %v458 = vadd.f32 0.0, %v457
        %v459 = vpop.f32.mrb[0].mxu0
        %v460 = vpop.f32.mrb[0].mxu0
        %v461 = vadd.f32 0.0, %v460
        %v462 = vpop.f32.mrb[0].mxu0
        %463 = vmatprep.mubr.bf16.mxu0 0
        %464 = vmatmul.mubr.bf16.gmra.mrb[0].mxu0 %v357
        %v465 = vpop.f32.mrb[0].mxu0
        %v466 = vadd.f32 0.0, %v465
        %v467 = vpop.f32.mrb[0].mxu0
        %v468 = vpop.f32.mrb[0].mxu0
        %v469 = vadd.f32 0.0, %v468
        %v470 = vpop.f32.mrb[0].mxu0
        %471 = vmatprep.mubr.bf16.mxu0 0
        %472 = vmatmul.mubr.bf16.gmra.mrb[0].mxu0 %v360
        %v473 = vpop.f32.mrb[0].mxu0
        %v474 = vadd.f32 0.0, %v473
        %v475 = vpop.f32.mrb[0].mxu0
        %v476 = vpop.f32.mrb[0].mxu0
        %v477 = vadd.f32 0.0, %v476
        %v478 = vpop.f32.mrb[0].mxu0
        %479 = vmatprep.mubr.bf16.mxu0 0
        %480 = vmatmul.mubr.bf16.gmra.mrb[0].mxu0 %v363
        %v481 = vpop.f32.mrb[0].mxu0
        %v482 = vadd.f32 0.0, %v481
        %v483 = vpop.f32.mrb[0].mxu0
        %v484 = vpop.f32.mrb[0].mxu0
        %v485 = vadd.f32 0.0, %v484
        %v486 = vpop.f32.mrb[0].mxu0
        %487 = vmatprep.mubr.bf16.mxu0 0
        %488 = vmatmul.mubr.bf16.gmra.mrb[0].mxu0 %v366
        %v489 = vpop.f32.mrb[0].mxu0
        %v490 = vadd.f32 0.0, %v489
        %v491 = vpop.f32.mrb[0].mxu0
        %v492 = vpop.f32.mrb[0].mxu0
        %v493 = vadd.f32 0.0, %v492
        %v494 = vpop.f32.mrb[0].mxu0
        %495 = vmatprep.mubr.bf16.mxu0 0
        %496 = vmatmul.mubr.bf16.gmra.mrb[0].mxu0 %v369
        %v497 = vpop.f32.mrb[0].mxu0
        %v498 = vadd.f32 0.0, %v497
        %v499 = vpop.f32.mrb[0].mxu0
        %v500 = vpop.f32.mrb[0].mxu0
        %v501 = vadd.f32 0.0, %v500
        %v502 = vpop.f32.mrb[0].mxu0
        %503 = vdwg.mxu0
        %v528 = vunpack.c.l.b16 %v217
        %v529 = vunpack.c.l.b16 %v218
        %v530 = vunpack.c.l.b16 %v219
        %v531 = vunpack.c.l.b16 %v220
        %v532 = vunpack.c.l.b16 %v221
        %v533 = vunpack.c.l.b16 %v222
        %v534 = vunpack.c.l.b16 %v223
        %v535 = vunpack.c.l.b16 %v224
        %v536 = vunpack.c.l.b16 %v225
        %v537 = vunpack.c.l.b16 %v226
        %v538 = vunpack.c.l.b16 %v227
        %v539 = vunpack.c.l.b16 %v228
        %v540 = vunpack.c.l.b16 %v229
        %v541 = vunpack.c.l.b16 %v230
        %v542 = vunpack.c.l.b16 %v231
        %v543 = vunpack.c.l.b16 %v232
        %v544 = vunpack.c.l.b16 %v233
        %v545 = vunpack.c.l.b16 %v234
        %v546 = vunpack.c.l.b16 %v235
        %v547 = vunpack.c.l.b16 %v236
        %v548 = vunpack.c.l.b16 %v237
        %v549 = vunpack.c.l.b16 %v238
        %v550 = vunpack.c.l.b16 %v239
        %v551 = vunpack.c.l.b16 %v240
        %v552 = vpack.c.b16 %v529, %v528
        %v553 = vpack.c.b16 %v531, %v530
        %v554 = vpack.c.b16 %v533, %v532
        %v555 = vpack.c.b16 %v535, %v534
        %v556 = vpack.c.b16 %v537, %v536
        %v557 = vpack.c.b16 %v539, %v538
        %v558 = vpack.c.b16 %v541, %v540
        %v559 = vpack.c.b16 %v543, %v542
        %v560 = vpack.c.b16 %v545, %v544
        %v561 = vpack.c.b16 %v547, %v546
        %v562 = vpack.c.b16 %v549, %v548
        %v563 = vpack.c.b16 %v551, %v550
        %v565 = vsel %vm334, %v552, 0
        %v568 = vsel %vm334, %v553, 0
        %v571 = vsel %vm334, %v554, 0
        %v574 = vsel %vm334, %v555, 0
        %v577 = vsel %vm334, %v556, 0
        %v580 = vsel %vm334, %v557, 0
        %v583 = vsel %vm334, %v558, 0
        %v586 = vsel %vm334, %v559, 0
        %v589 = vsel %vm334, %v560, 0
        %v592 = vsel %vm334, %v561, 0
        %v595 = vsel %vm334, %v562, 0
        %v598 = vsel %vm334, %v563, 0
        %v601 = vsel %vm371, %v242, 0
        %603 = vmatprep.subr.bf16.mxu0 0
        %604 = vmatpush1.bf16.msra.mxu0 %v601
        %605 = vmatprep.subr.bf16.mxu0 0
        %606 = vmatpush1.bf16.msra.mxu0 0
        %607 = vmatprep.subr.bf16.mxu0 0
        %608 = vmatpush1.bf16.msra.mxu0 0
        %609 = vmatprep.subr.bf16.mxu0 0
        %610 = vmatpush1.bf16.msra.mxu0 0
        %611 = vmatprep.subr.bf16.mxu0 0
        %612 = vmatpush1.bf16.msra.mxu0 0
        %613 = vmatprep.subr.bf16.mxu0 0
        %614 = vmatpush1.bf16.msra.mxu0 0
        %615 = vmatprep.subr.bf16.mxu0 0
        %616 = vmatpush1.bf16.msra.mxu0 0
        %617 = vmatprep.subr.bf16.mxu0 0
        %618 = vmatpush1.bf16.msra.mxu0 0
        %619 = vmatprep.subr.bf16.mxu0 0
        %620 = vmatpush1.bf16.msra.mxu0 0
        %621 = vmatprep.subr.bf16.mxu0 0
        %622 = vmatpush1.bf16.msra.mxu0 0
        %623 = vmatprep.subr.bf16.mxu0 0
        %624 = vmatpush1.bf16.msra.mxu0 0
        %625 = vmatprep.subr.bf16.mxu0 0
        %626 = vmatpush1.bf16.msra.mxu0 0
        %627 = vmatprep.subr.bf16.mxu0 0
        %628 = vmatpush1.bf16.msra.mxu0 0
        %629 = vmatprep.subr.bf16.mxu0 0
        %630 = vmatpush1.bf16.msra.mxu0 0
        %631 = vmatprep.subr.bf16.mxu0 0
        %632 = vmatpush1.bf16.msra.mxu0 0
        %633 = vmatprep.subr.bf16.mxu0 0
        %634 = vmatpush1.bf16.msra.mxu0 0
        %635 = vmatprep.mubr.bf16.mxu0 0
        %636 = vmatmul.mubr.bf16.gmra.mrb[0].mxu0 %v565
        %v637 = vpop.f32.mrb[0].mxu0
        %v638 = vadd.f32 %v410, %v637
        %v639 = vpop.f32.mrb[0].mxu0
        %v640 = vpop.f32.mrb[0].mxu0
        %v641 = vadd.f32 %v413, %v640
        %v642 = vpop.f32.mrb[0].mxu0
        %643 = vmatprep.mubr.bf16.mxu0 0
        %644 = vmatmul.mubr.bf16.gmra.mrb[0].mxu0 %v568
        %v645 = vpop.f32.mrb[0].mxu0
        %v646 = vadd.f32 %v418, %v645
        %v647 = vpop.f32.mrb[0].mxu0
        %v648 = vpop.f32.mrb[0].mxu0
        %v649 = vadd.f32 %v421, %v648
        %v650 = vpop.f32.mrb[0].mxu0
        %651 = vmatprep.mubr.bf16.mxu0 0
        %652 = vmatmul.mubr.bf16.gmra.mrb[0].mxu0 %v571
        %v653 = vpop.f32.mrb[0].mxu0
        %v654 = vadd.f32 %v426, %v653
        %v655 = vpop.f32.mrb[0].mxu0
        %v656 = vpop.f32.mrb[0].mxu0
        %v657 = vadd.f32 %v429, %v656
        %v658 = vpop.f32.mrb[0].mxu0
        %659 = vmatprep.mubr.bf16.mxu0 0
        %660 = vmatmul.mubr.bf16.gmra.mrb[0].mxu0 %v574
        %v661 = vpop.f32.mrb[0].mxu0
        %v662 = vadd.f32 %v434, %v661
        %v663 = vpop.f32.mrb[0].mxu0
        %v664 = vpop.f32.mrb[0].mxu0
        %v665 = vadd.f32 %v437, %v664
        %v666 = vpop.f32.mrb[0].mxu0
        %667 = vmatprep.mubr.bf16.mxu0 0
        %668 = vmatmul.mubr.bf16.gmra.mrb[0].mxu0 %v577
        %v669 = vpop.f32.mrb[0].mxu0
        %v670 = vadd.f32 %v442, %v669
        %v671 = vpop.f32.mrb[0].mxu0
        %v672 = vpop.f32.mrb[0].mxu0
        %v673 = vadd.f32 %v445, %v672
        %v674 = vpop.f32.mrb[0].mxu0
        %675 = vmatprep.mubr.bf16.mxu0 0
        %676 = vmatmul.mubr.bf16.gmra.mrb[0].mxu0 %v580
        %v677 = vpop.f32.mrb[0].mxu0
        %v678 = vadd.f32 %v450, %v677
        %v679 = vpop.f32.mrb[0].mxu0
        %v680 = vpop.f32.mrb[0].mxu0
        %v681 = vadd.f32 %v453, %v680
        %v682 = vpop.f32.mrb[0].mxu0
        %683 = vmatprep.mubr.bf16.mxu0 0
        %684 = vmatmul.mubr.bf16.gmra.mrb[0].mxu0 %v583
        %v685 = vpop.f32.mrb[0].mxu0
        %v686 = vadd.f32 %v458, %v685
        %v687 = vpop.f32.mrb[0].mxu0
        %v688 = vpop.f32.mrb[0].mxu0
        %v689 = vadd.f32 %v461, %v688
        %v690 = vpop.f32.mrb[0].mxu0
        %691 = vmatprep.mubr.bf16.mxu0 0
        %692 = vmatmul.mubr.bf16.gmra.mrb[0].mxu0 %v586
        %v693 = vpop.f32.mrb[0].mxu0
        %v694 = vadd.f32 %v466, %v693
        %v695 = vpop.f32.mrb[0].mxu0
        %v696 = vpop.f32.mrb[0].mxu0
        %v697 = vadd.f32 %v469, %v696
        %v698 = vpop.f32.mrb[0].mxu0
        %699 = vmatprep.mubr.bf16.mxu0 0
        %700 = vmatmul.mubr.bf16.gmra.mrb[0].mxu0 %v589
        %v701 = vpop.f32.mrb[0].mxu0
        %v702 = vadd.f32 %v474, %v701
        %v703 = vpop.f32.mrb[0].mxu0
        %v704 = vpop.f32.mrb[0].mxu0
        %v705 = vadd.f32 %v477, %v704
        %v706 = vpop.f32.mrb[0].mxu0
        %707 = vmatprep.mubr.bf16.mxu0 0
        %708 = vmatmul.mubr.bf16.gmra.mrb[0].mxu0 %v592
        %v709 = vpop.f32.mrb[0].mxu0
        %v710 = vadd.f32 %v482, %v709
        %v711 = vpop.f32.mrb[0].mxu0
        %v712 = vpop.f32.mrb[0].mxu0
        %v713 = vadd.f32 %v485, %v712
        %v714 = vpop.f32.mrb[0].mxu0
        %715 = vmatprep.mubr.bf16.mxu0 0
        %716 = vmatmul.mubr.bf16.gmra.mrb[0].mxu0 %v595
        %v717 = vpop.f32.mrb[0].mxu0
        %v718 = vadd.f32 %v490, %v717
        %v719 = vpop.f32.mrb[0].mxu0
        %v720 = vpop.f32.mrb[0].mxu0
        %v721 = vadd.f32 %v493, %v720
        %v722 = vpop.f32.mrb[0].mxu0
        %723 = vmatprep.mubr.bf16.mxu0 0
        %724 = vmatmul.mubr.bf16.gmra.mrb[0].mxu0 %v598
        %v725 = vpop.f32.mrb[0].mxu0
        %v726 = vadd.f32 %v498, %v725
        %v727 = vpop.f32.mrb[0].mxu0
        %v728 = vpop.f32.mrb[0].mxu0
        %v729 = vadd.f32 %v501, %v728
        %v730 = vpop.f32.mrb[0].mxu0
        %731 = vdwg.mxu0
        %s732 = sadd.s32 %s212, 48
        %s733 = sshra.s32 %s732, 3
        %s734 = sand.u32 %s732, 7
        %s735 = smul.addr %s733, 4
        %s736 = scalar_lea.vmem %s209, %s735
        %v737 = vld [vmem:[%s736] sm:$0xf]
        %v738 = vld [vmem:[%s736 + $0x4] sm:$0xf]
        %v739 = vld [vmem:[%s736 + $0x8] sm:$0xf]
        %v740 = vld [vmem:[%s736 + $0xc] sm:$0xf]
        %v741 = vld [vmem:[%s736 + $0x10] sm:$0xf]
        %v742 = vld [vmem:[%s736 + $0x14] sm:$0xf]
        %v743 = vld [vmem:[%s736 + $0x18] sm:$0xf]
        %v744 = vld [vmem:[%s736 + $0x1c] sm:$0xf]
        %v745 = vld [vmem:[%s736 + $0x20] sm:$0xf]
        %v746 = vld [vmem:[%s736 + $0x24] sm:$0xf]
        %v747 = vld [vmem:[%s736 + $0x28] sm:$0xf]
        %v748 = vld [vmem:[%s736 + $0x2c] sm:$0xf]
        %v749 = vld [vmem:[%s736 + $0x30] sm:$0xf]
        %v750 = vld [vmem:[%s736 + $0x34] sm:$0xf]
        %v751 = vld [vmem:[%s736 + $0x38] sm:$0xf]
        %v752 = vld [vmem:[%s736 + $0x3c] sm:$0xf]
        %v753 = vld [vmem:[%s736 + $0x40] sm:$0xf]
        %v754 = vld [vmem:[%s736 + $0x44] sm:$0xf]
        %v755 = vld [vmem:[%s736 + $0x48] sm:$0xf]
        %v756 = vld [vmem:[%s736 + $0x4c] sm:$0xf]
        %v757 = vld [vmem:[%s736 + $0x50] sm:$0xf]
        %v758 = vld [vmem:[%s736 + $0x54] sm:$0xf]
        %v759 = vld [vmem:[%s736 + $0x58] sm:$0xf]
        %v760 = vld [vmem:[%s736 + $0x5c] sm:$0xf]
        %s761 = scalar_lea.vmem %s1, 16
        %v762 = vld [vmem:[%s761] sm:$0x3]
        %v787 = vunpack.c.l.b16 %v737
        %v788 = vunpack.c.l.b16 %v738
        %v789 = vunpack.c.l.b16 %v739
        %v790 = vunpack.c.l.b16 %v740
        %v791 = vunpack.c.l.b16 %v741
        %v792 = vunpack.c.l.b16 %v742
        %v793 = vunpack.c.l.b16 %v743
        %v794 = vunpack.c.l.b16 %v744
        %v795 = vunpack.c.l.b16 %v745
        %v796 = vunpack.c.l.b16 %v746
        %v797 = vunpack.c.l.b16 %v747
        %v798 = vunpack.c.l.b16 %v748
        %v799 = vunpack.c.l.b16 %v749
        %v800 = vunpack.c.l.b16 %v750
        %v801 = vunpack.c.l.b16 %v751
        %v802 = vunpack.c.l.b16 %v752
        %v803 = vunpack.c.l.b16 %v753
        %v804 = vunpack.c.l.b16 %v754
        %v805 = vunpack.c.l.b16 %v755
        %v806 = vunpack.c.l.b16 %v756
        %v807 = vunpack.c.l.b16 %v757
        %v808 = vunpack.c.l.b16 %v758
        %v809 = vunpack.c.l.b16 %v759
        %v810 = vunpack.c.l.b16 %v760
        %v811 = vpack.c.b16 %v788, %v787
        %v812 = vpack.c.b16 %v790, %v789
        %v813 = vpack.c.b16 %v792, %v791
        %v814 = vpack.c.b16 %v794, %v793
        %v815 = vpack.c.b16 %v796, %v795
        %v816 = vpack.c.b16 %v798, %v797
        %v817 = vpack.c.b16 %v800, %v799
        %v818 = vpack.c.b16 %v802, %v801
        %v819 = vpack.c.b16 %v804, %v803
        %v820 = vpack.c.b16 %v806, %v805
        %v821 = vpack.c.b16 %v808, %v807
        %v822 = vpack.c.b16 %v810, %v809
        %v824 = vsel %vm334, %v811, 0
        %v827 = vsel %vm334, %v812, 0
        %v830 = vsel %vm334, %v813, 0
        %v833 = vsel %vm334, %v814, 0
        %v836 = vsel %vm334, %v815, 0
        %v839 = vsel %vm334, %v816, 0
        %v842 = vsel %vm334, %v817, 0
        %v845 = vsel %vm334, %v818, 0
        %v848 = vsel %vm334, %v819, 0
        %v851 = vsel %vm334, %v820, 0
        %v854 = vsel %vm334, %v821, 0
        %v857 = vsel %vm334, %v822, 0
        %v860 = vsel %vm371, %v762, 0
        %862 = vmatprep.subr.bf16.mxu0 0
        %863 = vmatpush1.bf16.msra.mxu0 %v860
        %864 = vmatprep.subr.bf16.mxu0 0
        %865 = vmatpush1.bf16.msra.mxu0 0
        %866 = vmatprep.subr.bf16.mxu0 0
        %867 = vmatpush1.bf16.msra.mxu0 0
        %868 = vmatprep.subr.bf16.mxu0 0
        %869 = vmatpush1.bf16.msra.mxu0 0
        %870 = vmatprep.subr.bf16.mxu0 0
        %871 = vmatpush1.bf16.msra.mxu0 0
        %872 = vmatprep.subr.bf16.mxu0 0
        %873 = vmatpush1.bf16.msra.mxu0 0
        %874 = vmatprep.subr.bf16.mxu0 0
        %875 = vmatpush1.bf16.msra.mxu0 0
        %876 = vmatprep.subr.bf16.mxu0 0
        %877 = vmatpush1.bf16.msra.mxu0 0
        %878 = vmatprep.subr.bf16.mxu0 0
        %879 = vmatpush1.bf16.msra.mxu0 0
        %880 = vmatprep.subr.bf16.mxu0 0
        %881 = vmatpush1.bf16.msra.mxu0 0
        %882 = vmatprep.subr.bf16.mxu0 0
        %883 = vmatpush1.bf16.msra.mxu0 0
        %884 = vmatprep.subr.bf16.mxu0 0
        %885 = vmatpush1.bf16.msra.mxu0 0
        %886 = vmatprep.subr.bf16.mxu0 0
        %887 = vmatpush1.bf16.msra.mxu0 0
        %888 = vmatprep.subr.bf16.mxu0 0
        %889 = vmatpush1.bf16.msra.mxu0 0
        %890 = vmatprep.subr.bf16.mxu0 0
        %891 = vmatpush1.bf16.msra.mxu0 0
        %892 = vmatprep.subr.bf16.mxu0 0
        %893 = vmatpush1.bf16.msra.mxu0 0
        %894 = vmatprep.mubr.bf16.mxu0 0
        %895 = vmatmul.mubr.bf16.gmra.mrb[0].mxu0 %v824
        %v896 = vpop.f32.mrb[0].mxu0
        %v897 = vadd.f32 0.0, %v896
        %v898 = vpop.f32.mrb[0].mxu0
        %v899 = vpop.f32.mrb[0].mxu0
        %v900 = vadd.f32 0.0, %v899
        %v901 = vpop.f32.mrb[0].mxu0
        %902 = vmatprep.mubr.bf16.mxu0 0
        %903 = vmatmul.mubr.bf16.gmra.mrb[0].mxu0 %v827
        %v904 = vpop.f32.mrb[0].mxu0
        %v905 = vadd.f32 0.0, %v904
        %v906 = vpop.f32.mrb[0].mxu0
        %v907 = vpop.f32.mrb[0].mxu0
        %v908 = vadd.f32 0.0, %v907
        %v909 = vpop.f32.mrb[0].mxu0
        %910 = vmatprep.mubr.bf16.mxu0 0
        %911 = vmatmul.mubr.bf16.gmra.mrb[0].mxu0 %v830
        %v912 = vpop.f32.mrb[0].mxu0
        %v913 = vadd.f32 0.0, %v912
        %v914 = vpop.f32.mrb[0].mxu0
        %v915 = vpop.f32.mrb[0].mxu0
        %v916 = vadd.f32 0.0, %v915
        %v917 = vpop.f32.mrb[0].mxu0
        %918 = vmatprep.mubr.bf16.mxu0 0
        %919 = vmatmul.mubr.bf16.gmra.mrb[0].mxu0 %v833
        %v920 = vpop.f32.mrb[0].mxu0
        %v921 = vadd.f32 0.0, %v920
        %v922 = vpop.f32.mrb[0].mxu0
        %v923 = vpop.f32.mrb[0].mxu0
        %v924 = vadd.f32 0.0, %v923
        %v925 = vpop.f32.mrb[0].mxu0
        %926 = vmatprep.mubr.bf16.mxu0 0
        %927 = vmatmul.mubr.bf16.gmra.mrb[0].mxu0 %v836
        %v928 = vpop.f32.mrb[0].mxu0
        %v929 = vadd.f32 0.0, %v928
        %v930 = vpop.f32.mrb[0].mxu0
        %v931 = vpop.f32.mrb[0].mxu0
        %v932 = vadd.f32 0.0, %v931
        %v933 = vpop.f32.mrb[0].mxu0
        %934 = vmatprep.mubr.bf16.mxu0 0
        %935 = vmatmul.mubr.bf16.gmra.mrb[0].mxu0 %v839
        %v936 = vpop.f32.mrb[0].mxu0
        %v937 = vadd.f32 0.0, %v936
        %v938 = vpop.f32.mrb[0].mxu0
        %v939 = vpop.f32.mrb[0].mxu0
        %v940 = vadd.f32 0.0, %v939
        %v941 = vpop.f32.mrb[0].mxu0
        %942 = vmatprep.mubr.bf16.mxu0 0
        %943 = vmatmul.mubr.bf16.gmra.mrb[0].mxu0 %v842
        %v944 = vpop.f32.mrb[0].mxu0
        %v945 = vadd.f32 0.0, %v944
        %v946 = vpop.f32.mrb[0].mxu0
        %v947 = vpop.f32.mrb[0].mxu0
        %v948 = vadd.f32 0.0, %v947
        %v949 = vpop.f32.mrb[0].mxu0
        %950 = vmatprep.mubr.bf16.mxu0 0
        %951 = vmatmul.mubr.bf16.gmra.mrb[0].mxu0 %v845
        %v952 = vpop.f32.mrb[0].mxu0
        %v953 = vadd.f32 0.0, %v952
        %v954 = vpop.f32.mrb[0].mxu0
        %v955 = vpop.f32.mrb[0].mxu0
        %v956 = vadd.f32 0.0, %v955
        %v957 = vpop.f32.mrb[0].mxu0
        %958 = vmatprep.mubr.bf16.mxu0 0
        %959 = vmatmul.mubr.bf16.gmra.mrb[0].mxu0 %v848
        %v960 = vpop.f32.mrb[0].mxu0
        %v961 = vadd.f32 0.0, %v960
        %v962 = vpop.f32.mrb[0].mxu0
        %v963 = vpop.f32.mrb[0].mxu0
        %v964 = vadd.f32 0.0, %v963
        %v965 = vpop.f32.mrb[0].mxu0
        %966 = vmatprep.mubr.bf16.mxu0 0
        %967 = vmatmul.mubr.bf16.gmra.mrb[0].mxu0 %v851
        %v968 = vpop.f32.mrb[0].mxu0
        %v969 = vadd.f32 0.0, %v968
        %v970 = vpop.f32.mrb[0].mxu0
        %v971 = vpop.f32.mrb[0].mxu0
        %v972 = vadd.f32 0.0, %v971
        %v973 = vpop.f32.mrb[0].mxu0
        %974 = vmatprep.mubr.bf16.mxu0 0
        %975 = vmatmul.mubr.bf16.gmra.mrb[0].mxu0 %v854
        %v976 = vpop.f32.mrb[0].mxu0
        %v977 = vadd.f32 0.0, %v976
        %v978 = vpop.f32.mrb[0].mxu0
        %v979 = vpop.f32.mrb[0].mxu0
        %v980 = vadd.f32 0.0, %v979
        %v981 = vpop.f32.mrb[0].mxu0
        %982 = vmatprep.mubr.bf16.mxu0 0
        %983 = vmatmul.mubr.bf16.gmra.mrb[0].mxu0 %v857
        %v984 = vpop.f32.mrb[0].mxu0
        %v985 = vadd.f32 0.0, %v984
        %v986 = vpop.f32.mrb[0].mxu0
        %v987 = vpop.f32.mrb[0].mxu0
        %v988 = vadd.f32 0.0, %v987
        %v989 = vpop.f32.mrb[0].mxu0
        %990 = vdwg.mxu0
        %v991 = vadd.f32 %v638, %v897
        %v992 = vadd.f32 %v641, %v900
        %v993 = vadd.f32 %v646, %v905
        %v994 = vadd.f32 %v649, %v908
        %v995 = vadd.f32 %v654, %v913
        %v996 = vadd.f32 %v657, %v916
        %v997 = vadd.f32 %v662, %v921
        %v998 = vadd.f32 %v665, %v924
        %v999 = vadd.f32 %v670, %v929
        %v1000 = vadd.f32 %v673, %v932
        %v1001 = vadd.f32 %v678, %v937
        %v1002 = vadd.f32 %v681, %v940
        %v1003 = vadd.f32 %v686, %v945
        %v1004 = vadd.f32 %v689, %v948
        %v1005 = vadd.f32 %v694, %v953
        %v1006 = vadd.f32 %v697, %v956
        %v1007 = vadd.f32 %v702, %v961
        %v1008 = vadd.f32 %v705, %v964
        %v1009 = vadd.f32 %v710, %v969
        %v1010 = vadd.f32 %v713, %v972
        %v1011 = vadd.f32 %v718, %v977
        %v1012 = vadd.f32 %v721, %v980
        %v1013 = vadd.f32 %v726, %v985
        %v1014 = vadd.f32 %v729, %v988
        %v1015 = vrot.slane %v991, 1
        %v1016 = vrot.slane %v992, 1
        %v1017 = vrot.slane %v993, 1
        %v1018 = vrot.slane %v994, 1
        %v1019 = vrot.slane %v995, 1
        %v1020 = vrot.slane %v996, 1
        %v1021 = vrot.slane %v997, 1
        %v1022 = vrot.slane %v998, 1
        %v1023 = vrot.slane %v999, 1
        %v1024 = vrot.slane %v1000, 1
        %v1025 = vrot.slane %v1001, 1
        %v1026 = vrot.slane %v1002, 1
        %v1027 = vrot.slane %v1003, 1
        %v1028 = vrot.slane %v1004, 1
        %v1029 = vrot.slane %v1005, 1
        %v1030 = vrot.slane %v1006, 1
        %v1031 = vrot.slane %v1007, 1
        %v1032 = vrot.slane %v1008, 1
        %v1033 = vrot.slane %v1009, 1
        %v1034 = vrot.slane %v1010, 1
        %v1035 = vrot.slane %v1011, 1
        %v1036 = vrot.slane %v1012, 1
        %v1037 = vrot.slane %v1013, 1
        %v1038 = vrot.slane %v1014, 1
        %v1039 = vlaneseq
        %v1040 = vshrl.u32 %v1039, 7
        %vm1041 = vcmp.lt.s32.totalorder %v1040, 7
        %v1042 = vsel %vm1041, %v1037, %v1038
        %v1043 = vsel %vm1041, %v1036, %v1037
        %v1044 = vsel %vm1041, %v1035, %v1036
        %v1045 = vsel %vm1041, %v1034, %v1035
        %v1046 = vsel %vm1041, %v1033, %v1034
        %v1047 = vsel %vm1041, %v1032, %v1033
        %v1048 = vsel %vm1041, %v1031, %v1032
        %v1049 = vsel %vm1041, %v1030, %v1031
        %v1050 = vsel %vm1041, %v1029, %v1030
        %v1051 = vsel %vm1041, %v1028, %v1029
        %v1052 = vsel %vm1041, %v1027, %v1028
        %v1053 = vsel %vm1041, %v1026, %v1027
        %v1054 = vsel %vm1041, %v1025, %v1026
        %v1055 = vsel %vm1041, %v1024, %v1025
        %v1056 = vsel %vm1041, %v1023, %v1024
        %v1057 = vsel %vm1041, %v1022, %v1023
        %v1058 = vsel %vm1041, %v1021, %v1022
        %v1059 = vsel %vm1041, %v1020, %v1021
        %v1060 = vsel %vm1041, %v1019, %v1020
        %v1061 = vsel %vm1041, %v1018, %v1019
        %v1062 = vsel %vm1041, %v1017, %v1018
        %v1063 = vsel %vm1041, %v1016, %v1017
        %v1064 = vsel %vm1041, %v1015, %v1016
        %v1065 = vsel %vm1041, %v1038, %v1015
        %s1066 = scalar_lea.vmem %s1, 2
        %v1067 = vld [vmem:[%s1066] sm:$0x3]
        %v1069 = vsel %vm371, %v1067, 0
        %1071 = vmatprep.subr.bf16.mxu0 0
        %1072 = vmatpush1.bf16.msra.mxu0 %v1069
        %1073 = vmatprep.subr.bf16.mxu0 0
        %1074 = vmatpush1.bf16.msra.mxu0 0
        %1075 = vmatprep.subr.bf16.mxu0 0
        %1076 = vmatpush1.bf16.msra.mxu0 0
        %1077 = vmatprep.subr.bf16.mxu0 0
        %1078 = vmatpush1.bf16.msra.mxu0 0
        %1079 = vmatprep.subr.bf16.mxu0 0
        %1080 = vmatpush1.bf16.msra.mxu0 0
        %1081 = vmatprep.subr.bf16.mxu0 0
        %1082 = vmatpush1.bf16.msra.mxu0 0
        %1083 = vmatprep.subr.bf16.mxu0 0
        %1084 = vmatpush1.bf16.msra.mxu0 0
        %1085 = vmatprep.subr.bf16.mxu0 0
        %1086 = vmatpush1.bf16.msra.mxu0 0
        %1087 = vmatprep.subr.bf16.mxu0 0
        %1088 = vmatpush1.bf16.msra.mxu0 0
        %1089 = vmatprep.subr.bf16.mxu0 0
        %1090 = vmatpush1.bf16.msra.mxu0 0
        %1091 = vmatprep.subr.bf16.mxu0 0
        %1092 = vmatpush1.bf16.msra.mxu0 0
        %1093 = vmatprep.subr.bf16.mxu0 0
        %1094 = vmatpush1.bf16.msra.mxu0 0
        %1095 = vmatprep.subr.bf16.mxu0 0
        %1096 = vmatpush1.bf16.msra.mxu0 0
        %1097 = vmatprep.subr.bf16.mxu0 0
        %1098 = vmatpush1.bf16.msra.mxu0 0
        %1099 = vmatprep.subr.bf16.mxu0 0
        %1100 = vmatpush1.bf16.msra.mxu0 0
        %1101 = vmatprep.subr.bf16.mxu0 0
        %1102 = vmatpush1.bf16.msra.mxu0 0
        %1103 = vmatprep.mubr.bf16.mxu0 0
        %1104 = vmatmul.mubr.bf16.gmra.mrb[0].mxu0 %v565
        %v1105 = vpop.f32.mrb[0].mxu0
        %v1106 = vadd.f32 0.0, %v1105
        %v1107 = vpop.f32.mrb[0].mxu0
        %v1108 = vpop.f32.mrb[0].mxu0
        %v1109 = vadd.f32 0.0, %v1108
        %v1110 = vpop.f32.mrb[0].mxu0
        %1111 = vmatprep.mubr.bf16.mxu0 0
        %1112 = vmatmul.mubr.bf16.gmra.mrb[0].mxu0 %v568
        %v1113 = vpop.f32.mrb[0].mxu0
        %v1114 = vadd.f32 0.0, %v1113
        %v1115 = vpop.f32.mrb[0].mxu0
        %v1116 = vpop.f32.mrb[0].mxu0
        %v1117 = vadd.f32 0.0, %v1116
        %v1118 = vpop.f32.mrb[0].mxu0
        %1119 = vmatprep.mubr.bf16.mxu0 0
        %1120 = vmatmul.mubr.bf16.gmra.mrb[0].mxu0 %v571
        %v1121 = vpop.f32.mrb[0].mxu0
        %v1122 = vadd.f32 0.0, %v1121
        %v1123 = vpop.f32.mrb[0].mxu0
        %v1124 = vpop.f32.mrb[0].mxu0
        %v1125 = vadd.f32 0.0, %v1124
        %v1126 = vpop.f32.mrb[0].mxu0
        %1127 = vmatprep.mubr.bf16.mxu0 0
        %1128 = vmatmul.mubr.bf16.gmra.mrb[0].mxu0 %v574
        %v1129 = vpop.f32.mrb[0].mxu0
        %v1130 = vadd.f32 0.0, %v1129
        %v1131 = vpop.f32.mrb[0].mxu0
        %v1132 = vpop.f32.mrb[0].mxu0
        %v1133 = vadd.f32 0.0, %v1132
        %v1134 = vpop.f32.mrb[0].mxu0
        %1135 = vmatprep.mubr.bf16.mxu0 0
        %1136 = vmatmul.mubr.bf16.gmra.mrb[0].mxu0 %v577
        %v1137 = vpop.f32.mrb[0].mxu0
        %v1138 = vadd.f32 0.0, %v1137
        %v1139 = vpop.f32.mrb[0].mxu0
        %v1140 = vpop.f32.mrb[0].mxu0
        %v1141 = vadd.f32 0.0, %v1140
        %v1142 = vpop.f32.mrb[0].mxu0
        %1143 = vmatprep.mubr.bf16.mxu0 0
        %1144 = vmatmul.mubr.bf16.gmra.mrb[0].mxu0 %v580
        %v1145 = vpop.f32.mrb[0].mxu0
        %v1146 = vadd.f32 0.0, %v1145
        %v1147 = vpop.f32.mrb[0].mxu0
        %v1148 = vpop.f32.mrb[0].mxu0
        %v1149 = vadd.f32 0.0, %v1148
        %v1150 = vpop.f32.mrb[0].mxu0
        %1151 = vmatprep.mubr.bf16.mxu0 0
        %1152 = vmatmul.mubr.bf16.gmra.mrb[0].mxu0 %v583
        %v1153 = vpop.f32.mrb[0].mxu0
        %v1154 = vadd.f32 0.0, %v1153
        %v1155 = vpop.f32.mrb[0].mxu0
        %v1156 = vpop.f32.mrb[0].mxu0
        %v1157 = vadd.f32 0.0, %v1156
        %v1158 = vpop.f32.mrb[0].mxu0
        %1159 = vmatprep.mubr.bf16.mxu0 0
        %1160 = vmatmul.mubr.bf16.gmra.mrb[0].mxu0 %v586
        %v1161 = vpop.f32.mrb[0].mxu0
        %v1162 = vadd.f32 0.0, %v1161
        %v1163 = vpop.f32.mrb[0].mxu0
        %v1164 = vpop.f32.mrb[0].mxu0
        %v1165 = vadd.f32 0.0, %v1164
        %v1166 = vpop.f32.mrb[0].mxu0
        %1167 = vmatprep.mubr.bf16.mxu0 0
        %1168 = vmatmul.mubr.bf16.gmra.mrb[0].mxu0 %v589
        %v1169 = vpop.f32.mrb[0].mxu0
        %v1170 = vadd.f32 0.0, %v1169
        %v1171 = vpop.f32.mrb[0].mxu0
        %v1172 = vpop.f32.mrb[0].mxu0
        %v1173 = vadd.f32 0.0, %v1172
        %v1174 = vpop.f32.mrb[0].mxu0
        %1175 = vmatprep.mubr.bf16.mxu0 0
        %1176 = vmatmul.mubr.bf16.gmra.mrb[0].mxu0 %v592
        %v1177 = vpop.f32.mrb[0].mxu0
        %v1178 = vadd.f32 0.0, %v1177
        %v1179 = vpop.f32.mrb[0].mxu0
        %v1180 = vpop.f32.mrb[0].mxu0
        %v1181 = vadd.f32 0.0, %v1180
        %v1182 = vpop.f32.mrb[0].mxu0
        %1183 = vmatprep.mubr.bf16.mxu0 0
        %1184 = vmatmul.mubr.bf16.gmra.mrb[0].mxu0 %v595
        %v1185 = vpop.f32.mrb[0].mxu0
        %v1186 = vadd.f32 0.0, %v1185
        %v1187 = vpop.f32.mrb[0].mxu0
        %v1188 = vpop.f32.mrb[0].mxu0
        %v1189 = vadd.f32 0.0, %v1188
        %v1190 = vpop.f32.mrb[0].mxu0
        %1191 = vmatprep.mubr.bf16.mxu0 0
        %1192 = vmatmul.mubr.bf16.gmra.mrb[0].mxu0 %v598
        %v1193 = vpop.f32.mrb[0].mxu0
        %v1194 = vadd.f32 0.0, %v1193
        %v1195 = vpop.f32.mrb[0].mxu0
        %v1196 = vpop.f32.mrb[0].mxu0
        %v1197 = vadd.f32 0.0, %v1196
        %v1198 = vpop.f32.mrb[0].mxu0
        %1199 = vdwg.mxu0
        %v1200 = vadd.f32 %v1064, %v1106
        %v1201 = vadd.f32 %v1063, %v1109
        %v1202 = vadd.f32 %v1062, %v1114
        %v1203 = vadd.f32 %v1061, %v1117
        %v1204 = vadd.f32 %v1060, %v1122
        %v1205 = vadd.f32 %v1059, %v1125
        %v1206 = vadd.f32 %v1058, %v1130
        %v1207 = vadd.f32 %v1057, %v1133
        %v1208 = vadd.f32 %v1056, %v1138
        %v1209 = vadd.f32 %v1055, %v1141
        %v1210 = vadd.f32 %v1054, %v1146
        %v1211 = vadd.f32 %v1053, %v1149
        %v1212 = vadd.f32 %v1052, %v1154
        %v1213 = vadd.f32 %v1051, %v1157
        %v1214 = vadd.f32 %v1050, %v1162
        %v1215 = vadd.f32 %v1049, %v1165
        %v1216 = vadd.f32 %v1048, %v1170
        %v1217 = vadd.f32 %v1047, %v1173
        %v1218 = vadd.f32 %v1046, %v1178
        %v1219 = vadd.f32 %v1045, %v1181
        %v1220 = vadd.f32 %v1044, %v1186
        %v1221 = vadd.f32 %v1043, %v1189
        %v1222 = vadd.f32 %v1042, %v1194
        %v1223 = vadd.f32 %v1065, %v1197
        %s1224 = scalar_lea.vmem %s1, 8
        %v1225 = vld [vmem:[%s1224] sm:$0x3]
        %v1227 = vsel %vm371, %v1225, 0
        %1229 = vmatprep.subr.bf16.mxu0 0
        %1230 = vmatpush1.bf16.msra.mxu0 %v1227
        %1231 = vmatprep.subr.bf16.mxu0 0
        %1232 = vmatpush1.bf16.msra.mxu0 0
        %1233 = vmatprep.subr.bf16.mxu0 0
        %1234 = vmatpush1.bf16.msra.mxu0 0
        %1235 = vmatprep.subr.bf16.mxu0 0
        %1236 = vmatpush1.bf16.msra.mxu0 0
        %1237 = vmatprep.subr.bf16.mxu0 0
        %1238 = vmatpush1.bf16.msra.mxu0 0
        %1239 = vmatprep.subr.bf16.mxu0 0
        %1240 = vmatpush1.bf16.msra.mxu0 0
        %1241 = vmatprep.subr.bf16.mxu0 0
        %1242 = vmatpush1.bf16.msra.mxu0 0
        %1243 = vmatprep.subr.bf16.mxu0 0
        %1244 = vmatpush1.bf16.msra.mxu0 0
        %1245 = vmatprep.subr.bf16.mxu0 0
        %1246 = vmatpush1.bf16.msra.mxu0 0
        %1247 = vmatprep.subr.bf16.mxu0 0
        %1248 = vmatpush1.bf16.msra.mxu0 0
        %1249 = vmatprep.subr.bf16.mxu0 0
        %1250 = vmatpush1.bf16.msra.mxu0 0
        %1251 = vmatprep.subr.bf16.mxu0 0
        %1252 = vmatpush1.bf16.msra.mxu0 0
        %1253 = vmatprep.subr.bf16.mxu0 0
        %1254 = vmatpush1.bf16.msra.mxu0 0
        %1255 = vmatprep.subr.bf16.mxu0 0
        %1256 = vmatpush1.bf16.msra.mxu0 0
        %1257 = vmatprep.subr.bf16.mxu0 0
        %1258 = vmatpush1.bf16.msra.mxu0 0
        %1259 = vmatprep.subr.bf16.mxu0 0
        %1260 = vmatpush1.bf16.msra.mxu0 0
        %1261 = vmatprep.mubr.bf16.mxu0 0
        %1262 = vmatmul.mubr.bf16.gmra.mrb[0].mxu0 %v336
        %v1263 = vpop.f32.mrb[0].mxu0
        %v1264 = vadd.f32 0.0, %v1263
        %v1265 = vpop.f32.mrb[0].mxu0
        %v1266 = vpop.f32.mrb[0].mxu0
        %v1267 = vadd.f32 0.0, %v1266
        %v1268 = vpop.f32.mrb[0].mxu0
        %1269 = vmatprep.mubr.bf16.mxu0 0
        %1270 = vmatmul.mubr.bf16.gmra.mrb[0].mxu0 %v339
        %v1271 = vpop.f32.mrb[0].mxu0
        %v1272 = vadd.f32 0.0, %v1271
        %v1273 = vpop.f32.mrb[0].mxu0
        %v1274 = vpop.f32.mrb[0].mxu0
        %v1275 = vadd.f32 0.0, %v1274
        %v1276 = vpop.f32.mrb[0].mxu0
        %1277 = vmatprep.mubr.bf16.mxu0 0
        %1278 = vmatmul.mubr.bf16.gmra.mrb[0].mxu0 %v342
        %v1279 = vpop.f32.mrb[0].mxu0
        %v1280 = vadd.f32 0.0, %v1279
        %v1281 = vpop.f32.mrb[0].mxu0
        %v1282 = vpop.f32.mrb[0].mxu0
        %v1283 = vadd.f32 0.0, %v1282
        %v1284 = vpop.f32.mrb[0].mxu0
        %1285 = vmatprep.mubr.bf16.mxu0 0
        %1286 = vmatmul.mubr.bf16.gmra.mrb[0].mxu0 %v345
        %v1287 = vpop.f32.mrb[0].mxu0
        %v1288 = vadd.f32 0.0, %v1287
        %v1289 = vpop.f32.mrb[0].mxu0
        %v1290 = vpop.f32.mrb[0].mxu0
        %v1291 = vadd.f32 0.0, %v1290
        %v1292 = vpop.f32.mrb[0].mxu0
        %1293 = vmatprep.mubr.bf16.mxu0 0
        %1294 = vmatmul.mubr.bf16.gmra.mrb[0].mxu0 %v348
        %v1295 = vpop.f32.mrb[0].mxu0
        %v1296 = vadd.f32 0.0, %v1295
        %v1297 = vpop.f32.mrb[0].mxu0
        %v1298 = vpop.f32.mrb[0].mxu0
        %v1299 = vadd.f32 0.0, %v1298
        %v1300 = vpop.f32.mrb[0].mxu0
        %1301 = vmatprep.mubr.bf16.mxu0 0
        %1302 = vmatmul.mubr.bf16.gmra.mrb[0].mxu0 %v351
        %v1303 = vpop.f32.mrb[0].mxu0
        %v1304 = vadd.f32 0.0, %v1303
        %v1305 = vpop.f32.mrb[0].mxu0
        %v1306 = vpop.f32.mrb[0].mxu0
        %v1307 = vadd.f32 0.0, %v1306
        %v1308 = vpop.f32.mrb[0].mxu0
        %1309 = vmatprep.mubr.bf16.mxu0 0
        %1310 = vmatmul.mubr.bf16.gmra.mrb[0].mxu0 %v354
        %v1311 = vpop.f32.mrb[0].mxu0
        %v1312 = vadd.f32 0.0, %v1311
        %v1313 = vpop.f32.mrb[0].mxu0
        %v1314 = vpop.f32.mrb[0].mxu0
        %v1315 = vadd.f32 0.0, %v1314
        %v1316 = vpop.f32.mrb[0].mxu0
        %1317 = vmatprep.mubr.bf16.mxu0 0
        %1318 = vmatmul.mubr.bf16.gmra.mrb[0].mxu0 %v357
        %v1319 = vpop.f32.mrb[0].mxu0
        %v1320 = vadd.f32 0.0, %v1319
        %v1321 = vpop.f32.mrb[0].mxu0
        %v1322 = vpop.f32.mrb[0].mxu0
        %v1323 = vadd.f32 0.0, %v1322
        %v1324 = vpop.f32.mrb[0].mxu0
        %1325 = vmatprep.mubr.bf16.mxu0 0
        %1326 = vmatmul.mubr.bf16.gmra.mrb[0].mxu0 %v360
        %v1327 = vpop.f32.mrb[0].mxu0
        %v1328 = vadd.f32 0.0, %v1327
        %v1329 = vpop.f32.mrb[0].mxu0
        %v1330 = vpop.f32.mrb[0].mxu0
        %v1331 = vadd.f32 0.0, %v1330
        %v1332 = vpop.f32.mrb[0].mxu0
        %1333 = vmatprep.mubr.bf16.mxu0 0
        %1334 = vmatmul.mubr.bf16.gmra.mrb[0].mxu0 %v363
        %v1335 = vpop.f32.mrb[0].mxu0
        %v1336 = vadd.f32 0.0, %v1335
        %v1337 = vpop.f32.mrb[0].mxu0
        %v1338 = vpop.f32.mrb[0].mxu0
        %v1339 = vadd.f32 0.0, %v1338
        %v1340 = vpop.f32.mrb[0].mxu0
        %1341 = vmatprep.mubr.bf16.mxu0 0
        %1342 = vmatmul.mubr.bf16.gmra.mrb[0].mxu0 %v366
        %v1343 = vpop.f32.mrb[0].mxu0
        %v1344 = vadd.f32 0.0, %v1343
        %v1345 = vpop.f32.mrb[0].mxu0
        %v1346 = vpop.f32.mrb[0].mxu0
        %v1347 = vadd.f32 0.0, %v1346
        %v1348 = vpop.f32.mrb[0].mxu0
        %1349 = vmatprep.mubr.bf16.mxu0 0
        %1350 = vmatmul.mubr.bf16.gmra.mrb[0].mxu0 %v369
        %v1351 = vpop.f32.mrb[0].mxu0
        %v1352 = vadd.f32 0.0, %v1351
        %v1353 = vpop.f32.mrb[0].mxu0
        %v1354 = vpop.f32.mrb[0].mxu0
        %v1355 = vadd.f32 0.0, %v1354
        %v1356 = vpop.f32.mrb[0].mxu0
        %1357 = vdwg.mxu0
        %v1358 = vadd.f32 %v1200, %v1264
        %v1359 = vadd.f32 %v1201, %v1267
        %v1360 = vadd.f32 %v1202, %v1272
        %v1361 = vadd.f32 %v1203, %v1275
        %v1362 = vadd.f32 %v1204, %v1280
        %v1363 = vadd.f32 %v1205, %v1283
        %v1364 = vadd.f32 %v1206, %v1288
        %v1365 = vadd.f32 %v1207, %v1291
        %v1366 = vadd.f32 %v1208, %v1296
        %v1367 = vadd.f32 %v1209, %v1299
        %v1368 = vadd.f32 %v1210, %v1304
        %v1369 = vadd.f32 %v1211, %v1307
        %v1370 = vadd.f32 %v1212, %v1312
        %v1371 = vadd.f32 %v1213, %v1315
        %v1372 = vadd.f32 %v1214, %v1320
        %v1373 = vadd.f32 %v1215, %v1323
        %v1374 = vadd.f32 %v1216, %v1328
        %v1375 = vadd.f32 %v1217, %v1331
        %v1376 = vadd.f32 %v1218, %v1336
        %v1377 = vadd.f32 %v1219, %v1339
        %v1378 = vadd.f32 %v1220, %v1344
        %v1379 = vadd.f32 %v1221, %v1347
        %v1380 = vadd.f32 %v1222, %v1352
        %v1381 = vadd.f32 %v1223, %v1355
        %s1382 = scalar_lea.vmem %s1, 14
        %v1383 = vld [vmem:[%s1382] sm:$0x3]
        %v1385 = vsel %vm371, %v1383, 0
        %1387 = vmatprep.subr.bf16.mxu0 0
        %1388 = vmatpush1.bf16.msra.mxu0 %v1385
        %1389 = vmatprep.subr.bf16.mxu0 0
        %1390 = vmatpush1.bf16.msra.mxu0 0
        %1391 = vmatprep.subr.bf16.mxu0 0
        %1392 = vmatpush1.bf16.msra.mxu0 0
        %1393 = vmatprep.subr.bf16.mxu0 0
        %1394 = vmatpush1.bf16.msra.mxu0 0
        %1395 = vmatprep.subr.bf16.mxu0 0
        %1396 = vmatpush1.bf16.msra.mxu0 0
        %1397 = vmatprep.subr.bf16.mxu0 0
        %1398 = vmatpush1.bf16.msra.mxu0 0
        %1399 = vmatprep.subr.bf16.mxu0 0
        %1400 = vmatpush1.bf16.msra.mxu0 0
        %1401 = vmatprep.subr.bf16.mxu0 0
        %1402 = vmatpush1.bf16.msra.mxu0 0
        %1403 = vmatprep.subr.bf16.mxu0 0
        %1404 = vmatpush1.bf16.msra.mxu0 0
        %1405 = vmatprep.subr.bf16.mxu0 0
        %1406 = vmatpush1.bf16.msra.mxu0 0
        %1407 = vmatprep.subr.bf16.mxu0 0
        %1408 = vmatpush1.bf16.msra.mxu0 0
        %1409 = vmatprep.subr.bf16.mxu0 0
        %1410 = vmatpush1.bf16.msra.mxu0 0
        %1411 = vmatprep.subr.bf16.mxu0 0
        %1412 = vmatpush1.bf16.msra.mxu0 0
        %1413 = vmatprep.subr.bf16.mxu0 0
        %1414 = vmatpush1.bf16.msra.mxu0 0
        %1415 = vmatprep.subr.bf16.mxu0 0
        %1416 = vmatpush1.bf16.msra.mxu0 0
        %1417 = vmatprep.subr.bf16.mxu0 0
        %1418 = vmatpush1.bf16.msra.mxu0 0
        %1419 = vmatprep.mubr.bf16.mxu0 0
        %1420 = vmatmul.mubr.bf16.gmra.mrb[0].mxu0 %v824
        %v1421 = vpop.f32.mrb[0].mxu0
        %v1422 = vadd.f32 0.0, %v1421
        %v1423 = vpop.f32.mrb[0].mxu0
        %v1424 = vpop.f32.mrb[0].mxu0
        %v1425 = vadd.f32 0.0, %v1424
        %v1426 = vpop.f32.mrb[0].mxu0
        %1427 = vmatprep.mubr.bf16.mxu0 0
        %1428 = vmatmul.mubr.bf16.gmra.mrb[0].mxu0 %v827
        %v1429 = vpop.f32.mrb[0].mxu0
        %v1430 = vadd.f32 0.0, %v1429
        %v1431 = vpop.f32.mrb[0].mxu0
        %v1432 = vpop.f32.mrb[0].mxu0
        %v1433 = vadd.f32 0.0, %v1432
        %v1434 = vpop.f32.mrb[0].mxu0
        %1435 = vmatprep.mubr.bf16.mxu0 0
        %1436 = vmatmul.mubr.bf16.gmra.mrb[0].mxu0 %v830
        %v1437 = vpop.f32.mrb[0].mxu0
        %v1438 = vadd.f32 0.0, %v1437
        %v1439 = vpop.f32.mrb[0].mxu0
        %v1440 = vpop.f32.mrb[0].mxu0
        %v1441 = vadd.f32 0.0, %v1440
        %v1442 = vpop.f32.mrb[0].mxu0
        %1443 = vmatprep.mubr.bf16.mxu0 0
        %1444 = vmatmul.mubr.bf16.gmra.mrb[0].mxu0 %v833
        %v1445 = vpop.f32.mrb[0].mxu0
        %v1446 = vadd.f32 0.0, %v1445
        %v1447 = vpop.f32.mrb[0].mxu0
        %v1448 = vpop.f32.mrb[0].mxu0
        %v1449 = vadd.f32 0.0, %v1448
        %v1450 = vpop.f32.mrb[0].mxu0
        %1451 = vmatprep.mubr.bf16.mxu0 0
        %1452 = vmatmul.mubr.bf16.gmra.mrb[0].mxu0 %v836
        %v1453 = vpop.f32.mrb[0].mxu0
        %v1454 = vadd.f32 0.0, %v1453
        %v1455 = vpop.f32.mrb[0].mxu0
        %v1456 = vpop.f32.mrb[0].mxu0
        %v1457 = vadd.f32 0.0, %v1456
        %v1458 = vpop.f32.mrb[0].mxu0
        %1459 = vmatprep.mubr.bf16.mxu0 0
        %1460 = vmatmul.mubr.bf16.gmra.mrb[0].mxu0 %v839
        %v1461 = vpop.f32.mrb[0].mxu0
        %v1462 = vadd.f32 0.0, %v1461
        %v1463 = vpop.f32.mrb[0].mxu0
        %v1464 = vpop.f32.mrb[0].mxu0
        %v1465 = vadd.f32 0.0, %v1464
        %v1466 = vpop.f32.mrb[0].mxu0
        %1467 = vmatprep.mubr.bf16.mxu0 0
        %1468 = vmatmul.mubr.bf16.gmra.mrb[0].mxu0 %v842
        %v1469 = vpop.f32.mrb[0].mxu0
        %v1470 = vadd.f32 0.0, %v1469
        %v1471 = vpop.f32.mrb[0].mxu0
        %v1472 = vpop.f32.mrb[0].mxu0
        %v1473 = vadd.f32 0.0, %v1472
        %v1474 = vpop.f32.mrb[0].mxu0
        %1475 = vmatprep.mubr.bf16.mxu0 0
        %1476 = vmatmul.mubr.bf16.gmra.mrb[0].mxu0 %v845
        %v1477 = vpop.f32.mrb[0].mxu0
        %v1478 = vadd.f32 0.0, %v1477
        %v1479 = vpop.f32.mrb[0].mxu0
        %v1480 = vpop.f32.mrb[0].mxu0
        %v1481 = vadd.f32 0.0, %v1480
        %v1482 = vpop.f32.mrb[0].mxu0
        %1483 = vmatprep.mubr.bf16.mxu0 0
        %1484 = vmatmul.mubr.bf16.gmra.mrb[0].mxu0 %v848
        %v1485 = vpop.f32.mrb[0].mxu0
        %v1486 = vadd.f32 0.0, %v1485
        %v1487 = vpop.f32.mrb[0].mxu0
        %v1488 = vpop.f32.mrb[0].mxu0
        %v1489 = vadd.f32 0.0, %v1488
        %v1490 = vpop.f32.mrb[0].mxu0
        %1491 = vmatprep.mubr.bf16.mxu0 0
        %1492 = vmatmul.mubr.bf16.gmra.mrb[0].mxu0 %v851
        %v1493 = vpop.f32.mrb[0].mxu0
        %v1494 = vadd.f32 0.0, %v1493
        %v1495 = vpop.f32.mrb[0].mxu0
        %v1496 = vpop.f32.mrb[0].mxu0
        %v1497 = vadd.f32 0.0, %v1496
        %v1498 = vpop.f32.mrb[0].mxu0
        %1499 = vmatprep.mubr.bf16.mxu0 0
        %1500 = vmatmul.mubr.bf16.gmra.mrb[0].mxu0 %v854
        %v1501 = vpop.f32.mrb[0].mxu0
        %v1502 = vadd.f32 0.0, %v1501
        %v1503 = vpop.f32.mrb[0].mxu0
        %v1504 = vpop.f32.mrb[0].mxu0
        %v1505 = vadd.f32 0.0, %v1504
        %v1506 = vpop.f32.mrb[0].mxu0
        %1507 = vmatprep.mubr.bf16.mxu0 0
        %1508 = vmatmul.mubr.bf16.gmra.mrb[0].mxu0 %v857
        %v1509 = vpop.f32.mrb[0].mxu0
        %v1510 = vadd.f32 0.0, %v1509
        %v1511 = vpop.f32.mrb[0].mxu0
        %v1512 = vpop.f32.mrb[0].mxu0
        %v1513 = vadd.f32 0.0, %v1512
        %v1514 = vpop.f32.mrb[0].mxu0
        %1515 = vdwg.mxu0
        %v1516 = vadd.f32 %v1358, %v1422
        %v1517 = vadd.f32 %v1359, %v1425
        %v1518 = vadd.f32 %v1360, %v1430
        %v1519 = vadd.f32 %v1361, %v1433
        %v1520 = vadd.f32 %v1362, %v1438
        %v1521 = vadd.f32 %v1363, %v1441
        %v1522 = vadd.f32 %v1364, %v1446
        %v1523 = vadd.f32 %v1365, %v1449
        %v1524 = vadd.f32 %v1366, %v1454
        %v1525 = vadd.f32 %v1367, %v1457
        %v1526 = vadd.f32 %v1368, %v1462
        %v1527 = vadd.f32 %v1369, %v1465
        %v1528 = vadd.f32 %v1370, %v1470
        %v1529 = vadd.f32 %v1371, %v1473
        %v1530 = vadd.f32 %v1372, %v1478
        %v1531 = vadd.f32 %v1373, %v1481
        %v1532 = vadd.f32 %v1374, %v1486
        %v1533 = vadd.f32 %v1375, %v1489
        %v1534 = vadd.f32 %v1376, %v1494
        %v1535 = vadd.f32 %v1377, %v1497
        %v1536 = vadd.f32 %v1378, %v1502
        %v1537 = vadd.f32 %v1379, %v1505
        %v1538 = vadd.f32 %v1380, %v1510
        %v1539 = vadd.f32 %v1381, %v1513
        %v1540 = vrot.slane %v1516, 1
        %v1541 = vrot.slane %v1517, 1
        %v1542 = vrot.slane %v1518, 1
        %v1543 = vrot.slane %v1519, 1
        %v1544 = vrot.slane %v1520, 1
        %v1545 = vrot.slane %v1521, 1
        %v1546 = vrot.slane %v1522, 1
        %v1547 = vrot.slane %v1523, 1
        %v1548 = vrot.slane %v1524, 1
        %v1549 = vrot.slane %v1525, 1
        %v1550 = vrot.slane %v1526, 1
        %v1551 = vrot.slane %v1527, 1
        %v1552 = vrot.slane %v1528, 1
        %v1553 = vrot.slane %v1529, 1
        %v1554 = vrot.slane %v1530, 1
        %v1555 = vrot.slane %v1531, 1
        %v1556 = vrot.slane %v1532, 1
        %v1557 = vrot.slane %v1533, 1
        %v1558 = vrot.slane %v1534, 1
        %v1559 = vrot.slane %v1535, 1
        %v1560 = vrot.slane %v1536, 1
        %v1561 = vrot.slane %v1537, 1
        %v1562 = vrot.slane %v1538, 1
        %v1563 = vrot.slane %v1539, 1
        %v1564 = vsel %vm1041, %v1562, %v1563
        %v1565 = vsel %vm1041, %v1561, %v1562
        %v1566 = vsel %vm1041, %v1560, %v1561
        %v1567 = vsel %vm1041, %v1559, %v1560
        %v1568 = vsel %vm1041, %v1558, %v1559
        %v1569 = vsel %vm1041, %v1557, %v1558
        %v1570 = vsel %vm1041, %v1556, %v1557
        %v1571 = vsel %vm1041, %v1555, %v1556
        %v1572 = vsel %vm1041, %v1554, %v1555
        %v1573 = vsel %vm1041, %v1553, %v1554
        %v1574 = vsel %vm1041, %v1552, %v1553
        %v1575 = vsel %vm1041, %v1551, %v1552
        %v1576 = vsel %vm1041, %v1550, %v1551
        %v1577 = vsel %vm1041, %v1549, %v1550
        %v1578 = vsel %vm1041, %v1548, %v1549
        %v1579 = vsel %vm1041, %v1547, %v1548
        %v1580 = vsel %vm1041, %v1546, %v1547
        %v1581 = vsel %vm1041, %v1545, %v1546
        %v1582 = vsel %vm1041, %v1544, %v1545
        %v1583 = vsel %vm1041, %v1543, %v1544
        %v1584 = vsel %vm1041, %v1542, %v1543
        %v1585 = vsel %vm1041, %v1541, %v1542
        %v1586 = vsel %vm1041, %v1540, %v1541
        %v1587 = vsel %vm1041, %v1563, %v1540
        %v1588 = vld [vmem:[%s1] sm:$0x3]
        %v1590 = vsel %vm371, %v1588, 0
        %1592 = vmatprep.subr.bf16.mxu0 0
        %1593 = vmatpush1.bf16.msra.mxu0 %v1590
        %1594 = vmatprep.subr.bf16.mxu0 0
        %1595 = vmatpush1.bf16.msra.mxu0 0
        %1596 = vmatprep.subr.bf16.mxu0 0
        %1597 = vmatpush1.bf16.msra.mxu0 0
        %1598 = vmatprep.subr.bf16.mxu0 0
        %1599 = vmatpush1.bf16.msra.mxu0 0
        %1600 = vmatprep.subr.bf16.mxu0 0
        %1601 = vmatpush1.bf16.msra.mxu0 0
        %1602 = vmatprep.subr.bf16.mxu0 0
        %1603 = vmatpush1.bf16.msra.mxu0 0
        %1604 = vmatprep.subr.bf16.mxu0 0
        %1605 = vmatpush1.bf16.msra.mxu0 0
        %1606 = vmatprep.subr.bf16.mxu0 0
        %1607 = vmatpush1.bf16.msra.mxu0 0
        %1608 = vmatprep.subr.bf16.mxu0 0
        %1609 = vmatpush1.bf16.msra.mxu0 0
        %1610 = vmatprep.subr.bf16.mxu0 0
        %1611 = vmatpush1.bf16.msra.mxu0 0
        %1612 = vmatprep.subr.bf16.mxu0 0
        %1613 = vmatpush1.bf16.msra.mxu0 0
        %1614 = vmatprep.subr.bf16.mxu0 0
        %1615 = vmatpush1.bf16.msra.mxu0 0
        %1616 = vmatprep.subr.bf16.mxu0 0
        %1617 = vmatpush1.bf16.msra.mxu0 0
        %1618 = vmatprep.subr.bf16.mxu0 0
        %1619 = vmatpush1.bf16.msra.mxu0 0
        %1620 = vmatprep.subr.bf16.mxu0 0
        %1621 = vmatpush1.bf16.msra.mxu0 0
        %1622 = vmatprep.subr.bf16.mxu0 0
        %1623 = vmatpush1.bf16.msra.mxu0 0
        %1624 = vmatprep.mubr.bf16.mxu0 0
        %1625 = vmatmul.mubr.bf16.gmra.mrb[0].mxu0 %v565
        %v1626 = vpop.f32.mrb[0].mxu0
        %v1627 = vadd.f32 0.0, %v1626
        %v1628 = vpop.f32.mrb[0].mxu0
        %v1629 = vpop.f32.mrb[0].mxu0
        %v1630 = vadd.f32 0.0, %v1629
        %v1631 = vpop.f32.mrb[0].mxu0
        %1632 = vmatprep.mubr.bf16.mxu0 0
        %1633 = vmatmul.mubr.bf16.gmra.mrb[0].mxu0 %v568
        %v1634 = vpop.f32.mrb[0].mxu0
        %v1635 = vadd.f32 0.0, %v1634
        %v1636 = vpop.f32.mrb[0].mxu0
        %v1637 = vpop.f32.mrb[0].mxu0
        %v1638 = vadd.f32 0.0, %v1637
        %v1639 = vpop.f32.mrb[0].mxu0
        %1640 = vmatprep.mubr.bf16.mxu0 0
        %1641 = vmatmul.mubr.bf16.gmra.mrb[0].mxu0 %v571
        %v1642 = vpop.f32.mrb[0].mxu0
        %v1643 = vadd.f32 0.0, %v1642
        %v1644 = vpop.f32.mrb[0].mxu0
        %v1645 = vpop.f32.mrb[0].mxu0
        %v1646 = vadd.f32 0.0, %v1645
        %v1647 = vpop.f32.mrb[0].mxu0
        %1648 = vmatprep.mubr.bf16.mxu0 0
        %1649 = vmatmul.mubr.bf16.gmra.mrb[0].mxu0 %v574
        %v1650 = vpop.f32.mrb[0].mxu0
        %v1651 = vadd.f32 0.0, %v1650
        %v1652 = vpop.f32.mrb[0].mxu0
        %v1653 = vpop.f32.mrb[0].mxu0
        %v1654 = vadd.f32 0.0, %v1653
        %v1655 = vpop.f32.mrb[0].mxu0
        %1656 = vmatprep.mubr.bf16.mxu0 0
        %1657 = vmatmul.mubr.bf16.gmra.mrb[0].mxu0 %v577
        %v1658 = vpop.f32.mrb[0].mxu0
        %v1659 = vadd.f32 0.0, %v1658
        %v1660 = vpop.f32.mrb[0].mxu0
        %v1661 = vpop.f32.mrb[0].mxu0
        %v1662 = vadd.f32 0.0, %v1661
        %v1663 = vpop.f32.mrb[0].mxu0
        %1664 = vmatprep.mubr.bf16.mxu0 0
        %1665 = vmatmul.mubr.bf16.gmra.mrb[0].mxu0 %v580
        %v1666 = vpop.f32.mrb[0].mxu0
        %v1667 = vadd.f32 0.0, %v1666
        %v1668 = vpop.f32.mrb[0].mxu0
        %v1669 = vpop.f32.mrb[0].mxu0
        %v1670 = vadd.f32 0.0, %v1669
        %v1671 = vpop.f32.mrb[0].mxu0
        %1672 = vmatprep.mubr.bf16.mxu0 0
        %1673 = vmatmul.mubr.bf16.gmra.mrb[0].mxu0 %v583
        %v1674 = vpop.f32.mrb[0].mxu0
        %v1675 = vadd.f32 0.0, %v1674
        %v1676 = vpop.f32.mrb[0].mxu0
        %v1677 = vpop.f32.mrb[0].mxu0
        %v1678 = vadd.f32 0.0, %v1677
        %v1679 = vpop.f32.mrb[0].mxu0
        %1680 = vmatprep.mubr.bf16.mxu0 0
        %1681 = vmatmul.mubr.bf16.gmra.mrb[0].mxu0 %v586
        %v1682 = vpop.f32.mrb[0].mxu0
        %v1683 = vadd.f32 0.0, %v1682
        %v1684 = vpop.f32.mrb[0].mxu0
        %v1685 = vpop.f32.mrb[0].mxu0
        %v1686 = vadd.f32 0.0, %v1685
        %v1687 = vpop.f32.mrb[0].mxu0
        %1688 = vmatprep.mubr.bf16.mxu0 0
        %1689 = vmatmul.mubr.bf16.gmra.mrb[0].mxu0 %v589
        %v1690 = vpop.f32.mrb[0].mxu0
        %v1691 = vadd.f32 0.0, %v1690
        %v1692 = vpop.f32.mrb[0].mxu0
        %v1693 = vpop.f32.mrb[0].mxu0
        %v1694 = vadd.f32 0.0, %v1693
        %v1695 = vpop.f32.mrb[0].mxu0
        %1696 = vmatprep.mubr.bf16.mxu0 0
        %1697 = vmatmul.mubr.bf16.gmra.mrb[0].mxu0 %v592
        %v1698 = vpop.f32.mrb[0].mxu0
        %v1699 = vadd.f32 0.0, %v1698
        %v1700 = vpop.f32.mrb[0].mxu0
        %v1701 = vpop.f32.mrb[0].mxu0
        %v1702 = vadd.f32 0.0, %v1701
        %v1703 = vpop.f32.mrb[0].mxu0
        %1704 = vmatprep.mubr.bf16.mxu0 0
        %1705 = vmatmul.mubr.bf16.gmra.mrb[0].mxu0 %v595
        %v1706 = vpop.f32.mrb[0].mxu0
        %v1707 = vadd.f32 0.0, %v1706
        %v1708 = vpop.f32.mrb[0].mxu0
        %v1709 = vpop.f32.mrb[0].mxu0
        %v1710 = vadd.f32 0.0, %v1709
        %v1711 = vpop.f32.mrb[0].mxu0
        %1712 = vmatprep.mubr.bf16.mxu0 0
        %1713 = vmatmul.mubr.bf16.gmra.mrb[0].mxu0 %v598
        %v1714 = vpop.f32.mrb[0].mxu0
        %v1715 = vadd.f32 0.0, %v1714
        %v1716 = vpop.f32.mrb[0].mxu0
        %v1717 = vpop.f32.mrb[0].mxu0
        %v1718 = vadd.f32 0.0, %v1717
        %v1719 = vpop.f32.mrb[0].mxu0
        %1720 = vdwg.mxu0
        %v1721 = vadd.f32 %v1586, %v1627
        %v1722 = vadd.f32 %v1585, %v1630
        %v1723 = vadd.f32 %v1584, %v1635
        %v1724 = vadd.f32 %v1583, %v1638
        %v1725 = vadd.f32 %v1582, %v1643
        %v1726 = vadd.f32 %v1581, %v1646
        %v1727 = vadd.f32 %v1580, %v1651
        %v1728 = vadd.f32 %v1579, %v1654
        %v1729 = vadd.f32 %v1578, %v1659
        %v1730 = vadd.f32 %v1577, %v1662
        %v1731 = vadd.f32 %v1576, %v1667
        %v1732 = vadd.f32 %v1575, %v1670
        %v1733 = vadd.f32 %v1574, %v1675
        %v1734 = vadd.f32 %v1573, %v1678
        %v1735 = vadd.f32 %v1572, %v1683
        %v1736 = vadd.f32 %v1571, %v1686
        %v1737 = vadd.f32 %v1570, %v1691
        %v1738 = vadd.f32 %v1569, %v1694
        %v1739 = vadd.f32 %v1568, %v1699
        %v1740 = vadd.f32 %v1567, %v1702
        %v1741 = vadd.f32 %v1566, %v1707
        %v1742 = vadd.f32 %v1565, %v1710
        %v1743 = vadd.f32 %v1564, %v1715
        %v1744 = vadd.f32 %v1587, %v1718
        %s1745 = scalar_lea.vmem %s1, 6
        %v1746 = vld [vmem:[%s1745] sm:$0x3]
        %v1748 = vsel %vm371, %v1746, 0
        %1750 = vmatprep.subr.bf16.mxu0 0
        %1751 = vmatpush1.bf16.msra.mxu0 %v1748
        %1752 = vmatprep.subr.bf16.mxu0 0
        %1753 = vmatpush1.bf16.msra.mxu0 0
        %1754 = vmatprep.subr.bf16.mxu0 0
        %1755 = vmatpush1.bf16.msra.mxu0 0
        %1756 = vmatprep.subr.bf16.mxu0 0
        %1757 = vmatpush1.bf16.msra.mxu0 0
        %1758 = vmatprep.subr.bf16.mxu0 0
        %1759 = vmatpush1.bf16.msra.mxu0 0
        %1760 = vmatprep.subr.bf16.mxu0 0
        %1761 = vmatpush1.bf16.msra.mxu0 0
        %1762 = vmatprep.subr.bf16.mxu0 0
        %1763 = vmatpush1.bf16.msra.mxu0 0
        %1764 = vmatprep.subr.bf16.mxu0 0
        %1765 = vmatpush1.bf16.msra.mxu0 0
        %1766 = vmatprep.subr.bf16.mxu0 0
        %1767 = vmatpush1.bf16.msra.mxu0 0
        %1768 = vmatprep.subr.bf16.mxu0 0
        %1769 = vmatpush1.bf16.msra.mxu0 0
        %1770 = vmatprep.subr.bf16.mxu0 0
        %1771 = vmatpush1.bf16.msra.mxu0 0
        %1772 = vmatprep.subr.bf16.mxu0 0
        %1773 = vmatpush1.bf16.msra.mxu0 0
        %1774 = vmatprep.subr.bf16.mxu0 0
        %1775 = vmatpush1.bf16.msra.mxu0 0
        %1776 = vmatprep.subr.bf16.mxu0 0
        %1777 = vmatpush1.bf16.msra.mxu0 0
        %1778 = vmatprep.subr.bf16.mxu0 0
        %1779 = vmatpush1.bf16.msra.mxu0 0
        %1780 = vmatprep.subr.bf16.mxu0 0
        %1781 = vmatpush1.bf16.msra.mxu0 0
        %1782 = vmatprep.mubr.bf16.mxu0 0
        %1783 = vmatmul.mubr.bf16.gmra.mrb[0].mxu0 %v336
        %v1784 = vpop.f32.mrb[0].mxu0
        %v1785 = vadd.f32 0.0, %v1784
        %v1786 = vpop.f32.mrb[0].mxu0
        %v1787 = vpop.f32.mrb[0].mxu0
        %v1788 = vadd.f32 0.0, %v1787
        %v1789 = vpop.f32.mrb[0].mxu0
        %1790 = vmatprep.mubr.bf16.mxu0 0
        %1791 = vmatmul.mubr.bf16.gmra.mrb[0].mxu0 %v339
        %v1792 = vpop.f32.mrb[0].mxu0
        %v1793 = vadd.f32 0.0, %v1792
        %v1794 = vpop.f32.mrb[0].mxu0
        %v1795 = vpop.f32.mrb[0].mxu0
        %v1796 = vadd.f32 0.0, %v1795
        %v1797 = vpop.f32.mrb[0].mxu0
        %1798 = vmatprep.mubr.bf16.mxu0 0
        %1799 = vmatmul.mubr.bf16.gmra.mrb[0].mxu0 %v342
        %v1800 = vpop.f32.mrb[0].mxu0
        %v1801 = vadd.f32 0.0, %v1800
        %v1802 = vpop.f32.mrb[0].mxu0
        %v1803 = vpop.f32.mrb[0].mxu0
        %v1804 = vadd.f32 0.0, %v1803
        %v1805 = vpop.f32.mrb[0].mxu0
        %1806 = vmatprep.mubr.bf16.mxu0 0
        %1807 = vmatmul.mubr.bf16.gmra.mrb[0].mxu0 %v345
        %v1808 = vpop.f32.mrb[0].mxu0
        %v1809 = vadd.f32 0.0, %v1808
        %v1810 = vpop.f32.mrb[0].mxu0
        %v1811 = vpop.f32.mrb[0].mxu0
        %v1812 = vadd.f32 0.0, %v1811
        %v1813 = vpop.f32.mrb[0].mxu0
        %1814 = vmatprep.mubr.bf16.mxu0 0
        %1815 = vmatmul.mubr.bf16.gmra.mrb[0].mxu0 %v348
        %v1816 = vpop.f32.mrb[0].mxu0
        %v1817 = vadd.f32 0.0, %v1816
        %v1818 = vpop.f32.mrb[0].mxu0
        %v1819 = vpop.f32.mrb[0].mxu0
        %v1820 = vadd.f32 0.0, %v1819
        %v1821 = vpop.f32.mrb[0].mxu0
        %1822 = vmatprep.mubr.bf16.mxu0 0
        %1823 = vmatmul.mubr.bf16.gmra.mrb[0].mxu0 %v351
        %v1824 = vpop.f32.mrb[0].mxu0
        %v1825 = vadd.f32 0.0, %v1824
        %v1826 = vpop.f32.mrb[0].mxu0
        %v1827 = vpop.f32.mrb[0].mxu0
        %v1828 = vadd.f32 0.0, %v1827
        %v1829 = vpop.f32.mrb[0].mxu0
        %1830 = vmatprep.mubr.bf16.mxu0 0
        %1831 = vmatmul.mubr.bf16.gmra.mrb[0].mxu0 %v354
        %v1832 = vpop.f32.mrb[0].mxu0
        %v1833 = vadd.f32 0.0, %v1832
        %v1834 = vpop.f32.mrb[0].mxu0
        %v1835 = vpop.f32.mrb[0].mxu0
        %v1836 = vadd.f32 0.0, %v1835
        %v1837 = vpop.f32.mrb[0].mxu0
        %1838 = vmatprep.mubr.bf16.mxu0 0
        %1839 = vmatmul.mubr.bf16.gmra.mrb[0].mxu0 %v357
        %v1840 = vpop.f32.mrb[0].mxu0
        %v1841 = vadd.f32 0.0, %v1840
        %v1842 = vpop.f32.mrb[0].mxu0
        %v1843 = vpop.f32.mrb[0].mxu0
        %v1844 = vadd.f32 0.0, %v1843
        %v1845 = vpop.f32.mrb[0].mxu0
        %1846 = vmatprep.mubr.bf16.mxu0 0
        %1847 = vmatmul.mubr.bf16.gmra.mrb[0].mxu0 %v360
        %v1848 = vpop.f32.mrb[0].mxu0
        %v1849 = vadd.f32 0.0, %v1848
        %v1850 = vpop.f32.mrb[0].mxu0
        %v1851 = vpop.f32.mrb[0].mxu0
        %v1852 = vadd.f32 0.0, %v1851
        %v1853 = vpop.f32.mrb[0].mxu0
        %1854 = vmatprep.mubr.bf16.mxu0 0
        %1855 = vmatmul.mubr.bf16.gmra.mrb[0].mxu0 %v363
        %v1856 = vpop.f32.mrb[0].mxu0
        %v1857 = vadd.f32 0.0, %v1856
        %v1858 = vpop.f32.mrb[0].mxu0
        %v1859 = vpop.f32.mrb[0].mxu0
        %v1860 = vadd.f32 0.0, %v1859
        %v1861 = vpop.f32.mrb[0].mxu0
        %1862 = vmatprep.mubr.bf16.mxu0 0
        %1863 = vmatmul.mubr.bf16.gmra.mrb[0].mxu0 %v366
        %v1864 = vpop.f32.mrb[0].mxu0
        %v1865 = vadd.f32 0.0, %v1864
        %v1866 = vpop.f32.mrb[0].mxu0
        %v1867 = vpop.f32.mrb[0].mxu0
        %v1868 = vadd.f32 0.0, %v1867
        %v1869 = vpop.f32.mrb[0].mxu0
        %1870 = vmatprep.mubr.bf16.mxu0 0
        %1871 = vmatmul.mubr.bf16.gmra.mrb[0].mxu0 %v369
        %v1872 = vpop.f32.mrb[0].mxu0
        %v1873 = vadd.f32 0.0, %v1872
        %v1874 = vpop.f32.mrb[0].mxu0
        %v1875 = vpop.f32.mrb[0].mxu0
        %v1876 = vadd.f32 0.0, %v1875
        %v1877 = vpop.f32.mrb[0].mxu0
        %1878 = vdwg.mxu0
        %v1879 = vadd.f32 %v1721, %v1785
        %v1880 = vadd.f32 %v1722, %v1788
        %v1881 = vadd.f32 %v1723, %v1793
        %v1882 = vadd.f32 %v1724, %v1796
        %v1883 = vadd.f32 %v1725, %v1801
        %v1884 = vadd.f32 %v1726, %v1804
        %v1885 = vadd.f32 %v1727, %v1809
        %v1886 = vadd.f32 %v1728, %v1812
        %v1887 = vadd.f32 %v1729, %v1817
        %v1888 = vadd.f32 %v1730, %v1820
        %v1889 = vadd.f32 %v1731, %v1825
        %v1890 = vadd.f32 %v1732, %v1828
        %v1891 = vadd.f32 %v1733, %v1833
        %v1892 = vadd.f32 %v1734, %v1836
        %v1893 = vadd.f32 %v1735, %v1841
        %v1894 = vadd.f32 %v1736, %v1844
        %v1895 = vadd.f32 %v1737, %v1849
        %v1896 = vadd.f32 %v1738, %v1852
        %v1897 = vadd.f32 %v1739, %v1857
        %v1898 = vadd.f32 %v1740, %v1860
        %v1899 = vadd.f32 %v1741, %v1865
        %v1900 = vadd.f32 %v1742, %v1868
        %v1901 = vadd.f32 %v1743, %v1873
        %v1902 = vadd.f32 %v1744, %v1876
        %s1903 = scalar_lea.vmem %s1, 12
        %v1904 = vld [vmem:[%s1903] sm:$0x3]
        %v1906 = vsel %vm371, %v1904, 0
        %1908 = vmatprep.subr.bf16.mxu0 0
        %1909 = vmatpush1.bf16.msra.mxu0 %v1906
        %1910 = vmatprep.subr.bf16.mxu0 0
        %1911 = vmatpush1.bf16.msra.mxu0 0
        %1912 = vmatprep.subr.bf16.mxu0 0
        %1913 = vmatpush1.bf16.msra.mxu0 0
        %1914 = vmatprep.subr.bf16.mxu0 0
        %1915 = vmatpush1.bf16.msra.mxu0 0
        %1916 = vmatprep.subr.bf16.mxu0 0
        %1917 = vmatpush1.bf16.msra.mxu0 0
        %1918 = vmatprep.subr.bf16.mxu0 0
        %1919 = vmatpush1.bf16.msra.mxu0 0
        %1920 = vmatprep.subr.bf16.mxu0 0
        %1921 = vmatpush1.bf16.msra.mxu0 0
        %1922 = vmatprep.subr.bf16.mxu0 0
        %1923 = vmatpush1.bf16.msra.mxu0 0
        %1924 = vmatprep.subr.bf16.mxu0 0
        %1925 = vmatpush1.bf16.msra.mxu0 0
        %1926 = vmatprep.subr.bf16.mxu0 0
        %1927 = vmatpush1.bf16.msra.mxu0 0
        %1928 = vmatprep.subr.bf16.mxu0 0
        %1929 = vmatpush1.bf16.msra.mxu0 0
        %1930 = vmatprep.subr.bf16.mxu0 0
        %1931 = vmatpush1.bf16.msra.mxu0 0
        %1932 = vmatprep.subr.bf16.mxu0 0
        %1933 = vmatpush1.bf16.msra.mxu0 0
        %1934 = vmatprep.subr.bf16.mxu0 0
        %1935 = vmatpush1.bf16.msra.mxu0 0
        %1936 = vmatprep.subr.bf16.mxu0 0
        %1937 = vmatpush1.bf16.msra.mxu0 0
        %1938 = vmatprep.subr.bf16.mxu0 0
        %1939 = vmatpush1.bf16.msra.mxu0 0
        %1940 = vmatprep.mubr.bf16.mxu0 0
        %1941 = vmatmul.mubr.bf16.gmra.mrb[0].mxu0 %v824
        %v1942 = vpop.f32.mrb[0].mxu0
        %v1943 = vadd.f32 0.0, %v1942
        %v1944 = vpop.f32.mrb[0].mxu0
        %v1945 = vpop.f32.mrb[0].mxu0
        %v1946 = vadd.f32 0.0, %v1945
        %v1947 = vpop.f32.mrb[0].mxu0
        %1948 = vmatprep.mubr.bf16.mxu0 0
        %1949 = vmatmul.mubr.bf16.gmra.mrb[0].mxu0 %v827
        %v1950 = vpop.f32.mrb[0].mxu0
        %v1951 = vadd.f32 0.0, %v1950
        %v1952 = vpop.f32.mrb[0].mxu0
        %v1953 = vpop.f32.mrb[0].mxu0
        %v1954 = vadd.f32 0.0, %v1953
        %v1955 = vpop.f32.mrb[0].mxu0
        %1956 = vmatprep.mubr.bf16.mxu0 0
        %1957 = vmatmul.mubr.bf16.gmra.mrb[0].mxu0 %v830
        %v1958 = vpop.f32.mrb[0].mxu0
        %v1959 = vadd.f32 0.0, %v1958
        %v1960 = vpop.f32.mrb[0].mxu0
        %v1961 = vpop.f32.mrb[0].mxu0
        %v1962 = vadd.f32 0.0, %v1961
        %v1963 = vpop.f32.mrb[0].mxu0
        %1964 = vmatprep.mubr.bf16.mxu0 0
        %1965 = vmatmul.mubr.bf16.gmra.mrb[0].mxu0 %v833
        %v1966 = vpop.f32.mrb[0].mxu0
        %v1967 = vadd.f32 0.0, %v1966
        %v1968 = vpop.f32.mrb[0].mxu0
        %v1969 = vpop.f32.mrb[0].mxu0
        %v1970 = vadd.f32 0.0, %v1969
        %v1971 = vpop.f32.mrb[0].mxu0
        %1972 = vmatprep.mubr.bf16.mxu0 0
        %1973 = vmatmul.mubr.bf16.gmra.mrb[0].mxu0 %v836
        %v1974 = vpop.f32.mrb[0].mxu0
        %v1975 = vadd.f32 0.0, %v1974
        %v1976 = vpop.f32.mrb[0].mxu0
        %v1977 = vpop.f32.mrb[0].mxu0
        %v1978 = vadd.f32 0.0, %v1977
        %v1979 = vpop.f32.mrb[0].mxu0
        %1980 = vmatprep.mubr.bf16.mxu0 0
        %1981 = vmatmul.mubr.bf16.gmra.mrb[0].mxu0 %v839
        %v1982 = vpop.f32.mrb[0].mxu0
        %v1983 = vadd.f32 0.0, %v1982
        %v1984 = vpop.f32.mrb[0].mxu0
        %v1985 = vpop.f32.mrb[0].mxu0
        %v1986 = vadd.f32 0.0, %v1985
        %v1987 = vpop.f32.mrb[0].mxu0
        %1988 = vmatprep.mubr.bf16.mxu0 0
        %1989 = vmatmul.mubr.bf16.gmra.mrb[0].mxu0 %v842
        %v1990 = vpop.f32.mrb[0].mxu0
        %v1991 = vadd.f32 0.0, %v1990
        %v1992 = vpop.f32.mrb[0].mxu0
        %v1993 = vpop.f32.mrb[0].mxu0
        %v1994 = vadd.f32 0.0, %v1993
        %v1995 = vpop.f32.mrb[0].mxu0
        %1996 = vmatprep.mubr.bf16.mxu0 0
        %1997 = vmatmul.mubr.bf16.gmra.mrb[0].mxu0 %v845
        %v1998 = vpop.f32.mrb[0].mxu0
        %v1999 = vadd.f32 0.0, %v1998
        %v2000 = vpop.f32.mrb[0].mxu0
        %v2001 = vpop.f32.mrb[0].mxu0
        %v2002 = vadd.f32 0.0, %v2001
        %v2003 = vpop.f32.mrb[0].mxu0
        %2004 = vmatprep.mubr.bf16.mxu0 0
        %2005 = vmatmul.mubr.bf16.gmra.mrb[0].mxu0 %v848
        %v2006 = vpop.f32.mrb[0].mxu0
        %v2007 = vadd.f32 0.0, %v2006
        %v2008 = vpop.f32.mrb[0].mxu0
        %v2009 = vpop.f32.mrb[0].mxu0
        %v2010 = vadd.f32 0.0, %v2009
        %v2011 = vpop.f32.mrb[0].mxu0
        %2012 = vmatprep.mubr.bf16.mxu0 0
        %2013 = vmatmul.mubr.bf16.gmra.mrb[0].mxu0 %v851
        %v2014 = vpop.f32.mrb[0].mxu0
        %v2015 = vadd.f32 0.0, %v2014
        %v2016 = vpop.f32.mrb[0].mxu0
        %v2017 = vpop.f32.mrb[0].mxu0
        %v2018 = vadd.f32 0.0, %v2017
        %v2019 = vpop.f32.mrb[0].mxu0
        %2020 = vmatprep.mubr.bf16.mxu0 0
        %2021 = vmatmul.mubr.bf16.gmra.mrb[0].mxu0 %v854
        %v2022 = vpop.f32.mrb[0].mxu0
        %v2023 = vadd.f32 0.0, %v2022
        %v2024 = vpop.f32.mrb[0].mxu0
        %v2025 = vpop.f32.mrb[0].mxu0
        %v2026 = vadd.f32 0.0, %v2025
        %v2027 = vpop.f32.mrb[0].mxu0
        %2028 = vmatprep.mubr.bf16.mxu0 0
        %2029 = vmatmul.mubr.bf16.gmra.mrb[0].mxu0 %v857
        %v2030 = vpop.f32.mrb[0].mxu0
        %v2031 = vadd.f32 0.0, %v2030
        %v2032 = vpop.f32.mrb[0].mxu0
        %v2033 = vpop.f32.mrb[0].mxu0
        %v2034 = vadd.f32 0.0, %v2033
        %v2035 = vpop.f32.mrb[0].mxu0
        %2036 = vdwg.mxu0
        %v2037 = vadd.f32 %v1879, %v1943
        %v2038 = vadd.f32 %v1880, %v1946
        %v2039 = vadd.f32 %v1881, %v1951
        %v2040 = vadd.f32 %v1882, %v1954
        %v2041 = vadd.f32 %v1883, %v1959
        %v2042 = vadd.f32 %v1884, %v1962
        %v2043 = vadd.f32 %v1885, %v1967
        %v2044 = vadd.f32 %v1886, %v1970
        %v2045 = vadd.f32 %v1887, %v1975
        %v2046 = vadd.f32 %v1888, %v1978
        %v2047 = vadd.f32 %v1889, %v1983
        %v2048 = vadd.f32 %v1890, %v1986
        %v2049 = vadd.f32 %v1891, %v1991
        %v2050 = vadd.f32 %v1892, %v1994
        %v2051 = vadd.f32 %v1893, %v1999
        %v2052 = vadd.f32 %v1894, %v2002
        %v2053 = vadd.f32 %v1895, %v2007
        %v2054 = vadd.f32 %v1896, %v2010
        %v2055 = vadd.f32 %v1897, %v2015
        %v2056 = vadd.f32 %v1898, %v2018
        %v2057 = vadd.f32 %v1899, %v2023
        %v2058 = vadd.f32 %v1900, %v2026
        %v2059 = vadd.f32 %v1901, %v2031
        %v2060 = vadd.f32 %v1902, %v2034
        %v2061 = vld [vmem:[%s2] sm:$0x1]
        %v2063 = vlaneseq
        %v2064 = vshrl.u32 %v2063, 7
        %v2065 = vsub.s32 0, %v2064
        %v2066 = vrot.slane %v2061, %v2065
        %v2068 = vmul.f32 %v2037, %v2066
        %v2069 = vmul.f32 %v2038, %v2066
        %v2070 = vmul.f32 %v2039, %v2066
        %v2071 = vmul.f32 %v2040, %v2066
        %v2072 = vmul.f32 %v2041, %v2066
        %v2073 = vmul.f32 %v2042, %v2066
        %v2074 = vmul.f32 %v2043, %v2066
        %v2075 = vmul.f32 %v2044, %v2066
        %v2076 = vmul.f32 %v2045, %v2066
        %v2077 = vmul.f32 %v2046, %v2066
        %v2078 = vmul.f32 %v2047, %v2066
        %v2079 = vmul.f32 %v2048, %v2066
        %v2080 = vmul.f32 %v2049, %v2066
        %v2081 = vmul.f32 %v2050, %v2066
        %v2082 = vmul.f32 %v2051, %v2066
        %v2083 = vmul.f32 %v2052, %v2066
        %v2084 = vmul.f32 %v2053, %v2066
        %v2085 = vmul.f32 %v2054, %v2066
        %v2086 = vmul.f32 %v2055, %v2066
        %v2087 = vmul.f32 %v2056, %v2066
        %v2088 = vmul.f32 %v2057, %v2066
        %v2089 = vmul.f32 %v2058, %v2066
        %v2090 = vmul.f32 %v2059, %v2066
        %v2091 = vmul.f32 %v2060, %v2066
        %v2092 = vld [vmem:[%s3] sm:$0x1]
        %v2094 = vlaneseq
        %v2095 = vshrl.u32 %v2094, 7
        %v2096 = vsub.s32 0, %v2095
        %v2097 = vrot.slane %v2092, %v2096
        %v2099 = vadd.f32 %v2068, %v2097
        %v2100 = vadd.f32 %v2069, %v2097
        %v2101 = vadd.f32 %v2070, %v2097
        %v2102 = vadd.f32 %v2071, %v2097
        %v2103 = vadd.f32 %v2072, %v2097
        %v2104 = vadd.f32 %v2073, %v2097
        %v2105 = vadd.f32 %v2074, %v2097
        %v2106 = vadd.f32 %v2075, %v2097
        %v2107 = vadd.f32 %v2076, %v2097
        %v2108 = vadd.f32 %v2077, %v2097
        %v2109 = vadd.f32 %v2078, %v2097
        %v2110 = vadd.f32 %v2079, %v2097
        %v2111 = vadd.f32 %v2080, %v2097
        %v2112 = vadd.f32 %v2081, %v2097
        %v2113 = vadd.f32 %v2082, %v2097
        %v2114 = vadd.f32 %v2083, %v2097
        %v2115 = vadd.f32 %v2084, %v2097
        %v2116 = vadd.f32 %v2085, %v2097
        %v2117 = vadd.f32 %v2086, %v2097
        %v2118 = vadd.f32 %v2087, %v2097
        %v2119 = vadd.f32 %v2088, %v2097
        %v2120 = vadd.f32 %v2089, %v2097
        %v2121 = vadd.f32 %v2090, %v2097
        %v2122 = vadd.f32 %v2091, %v2097
        %v2123 = vxor.u32 %v2099, 2147483648
        %v2124 = vxor.u32 %v2100, 2147483648
        %v2125 = vxor.u32 %v2101, 2147483648
        %v2126 = vxor.u32 %v2102, 2147483648
        %v2127 = vxor.u32 %v2103, 2147483648
        %v2128 = vxor.u32 %v2104, 2147483648
        %v2129 = vxor.u32 %v2105, 2147483648
        %v2130 = vxor.u32 %v2106, 2147483648
        %v2131 = vxor.u32 %v2107, 2147483648
        %v2132 = vxor.u32 %v2108, 2147483648
        %v2133 = vxor.u32 %v2109, 2147483648
        %v2134 = vxor.u32 %v2110, 2147483648
        %v2135 = vxor.u32 %v2111, 2147483648
        %v2136 = vxor.u32 %v2112, 2147483648
        %v2137 = vxor.u32 %v2113, 2147483648
        %v2138 = vxor.u32 %v2114, 2147483648
        %v2139 = vxor.u32 %v2115, 2147483648
        %v2140 = vxor.u32 %v2116, 2147483648
        %v2141 = vxor.u32 %v2117, 2147483648
        %v2142 = vxor.u32 %v2118, 2147483648
        %v2143 = vxor.u32 %v2119, 2147483648
        %v2144 = vxor.u32 %v2120, 2147483648
        %v2145 = vxor.u32 %v2121, 2147483648
        %v2146 = vxor.u32 %v2122, 2147483648
        %v2147 = vmul.f32 %v2123, 1.442695
        %v2148 = vpow.pop %v2147
        %v2149 = vmul.f32 %v2124, 1.442695
        %v2150 = vpow.pop %v2149
        %v2151 = vmul.f32 %v2125, 1.442695
        %v2152 = vpow.pop %v2151
        %v2153 = vmul.f32 %v2126, 1.442695
        %v2154 = vpow.pop %v2153
        %v2155 = vmul.f32 %v2127, 1.442695
        %v2156 = vpow.pop %v2155
        %v2157 = vmul.f32 %v2128, 1.442695
        %v2158 = vpow.pop %v2157
        %v2159 = vmul.f32 %v2129, 1.442695
        %v2160 = vpow.pop %v2159
        %v2161 = vmul.f32 %v2130, 1.442695
        %v2162 = vpow.pop %v2161
        %v2163 = vmul.f32 %v2131, 1.442695
        %v2164 = vpow.pop %v2163
        %v2165 = vmul.f32 %v2132, 1.442695
        %v2166 = vpow.pop %v2165
        %v2167 = vmul.f32 %v2133, 1.442695
        %v2168 = vpow.pop %v2167
        %v2169 = vmul.f32 %v2134, 1.442695
        %v2170 = vpow.pop %v2169
        %v2171 = vmul.f32 %v2135, 1.442695
        %v2172 = vpow.pop %v2171
        %v2173 = vmul.f32 %v2136, 1.442695
        %v2174 = vpow.pop %v2173
        %v2175 = vmul.f32 %v2137, 1.442695
        %v2176 = vpow.pop %v2175
        %v2177 = vmul.f32 %v2138, 1.442695
        %v2178 = vpow.pop %v2177
        %v2179 = vmul.f32 %v2139, 1.442695
        %v2180 = vpow.pop %v2179
        %v2181 = vmul.f32 %v2140, 1.442695
        %v2182 = vpow.pop %v2181
        %v2183 = vmul.f32 %v2141, 1.442695
        %v2184 = vpow.pop %v2183
        %v2185 = vmul.f32 %v2142, 1.442695
        %v2186 = vpow.pop %v2185
        %v2187 = vmul.f32 %v2143, 1.442695
        %v2188 = vpow.pop %v2187
        %v2189 = vmul.f32 %v2144, 1.442695
        %v2190 = vpow.pop %v2189
        %v2191 = vmul.f32 %v2145, 1.442695
        %v2192 = vpow.pop %v2191
        %v2193 = vmul.f32 %v2146, 1.442695
        %v2194 = vpow.pop %v2193
        %v2195 = vadd.f32 %v2148, 1.0
        %v2196 = vadd.f32 %v2150, 1.0
        %v2197 = vadd.f32 %v2152, 1.0
        %v2198 = vadd.f32 %v2154, 1.0
        %v2199 = vadd.f32 %v2156, 1.0
        %v2200 = vadd.f32 %v2158, 1.0
        %v2201 = vadd.f32 %v2160, 1.0
        %v2202 = vadd.f32 %v2162, 1.0
        %v2203 = vadd.f32 %v2164, 1.0
        %v2204 = vadd.f32 %v2166, 1.0
        %v2205 = vadd.f32 %v2168, 1.0
        %v2206 = vadd.f32 %v2170, 1.0
        %v2207 = vadd.f32 %v2172, 1.0
        %v2208 = vadd.f32 %v2174, 1.0
        %v2209 = vadd.f32 %v2176, 1.0
        %v2210 = vadd.f32 %v2178, 1.0
        %v2211 = vadd.f32 %v2180, 1.0
        %v2212 = vadd.f32 %v2182, 1.0
        %v2213 = vadd.f32 %v2184, 1.0
        %v2214 = vadd.f32 %v2186, 1.0
        %v2215 = vadd.f32 %v2188, 1.0
        %v2216 = vadd.f32 %v2190, 1.0
        %v2217 = vadd.f32 %v2192, 1.0
        %v2218 = vadd.f32 %v2194, 1.0
        %v2219 = vrcp.pop %v2195
        %v2220 = vmul.f32 1.0, %v2219
        %v2221 = vrcp.pop %v2196
        %v2222 = vmul.f32 1.0, %v2221
        %v2223 = vrcp.pop %v2197
        %v2224 = vmul.f32 1.0, %v2223
        %v2225 = vrcp.pop %v2198
        %v2226 = vmul.f32 1.0, %v2225
        %v2227 = vrcp.pop %v2199
        %v2228 = vmul.f32 1.0, %v2227
        %v2229 = vrcp.pop %v2200
        %v2230 = vmul.f32 1.0, %v2229
        %v2231 = vrcp.pop %v2201
        %v2232 = vmul.f32 1.0, %v2231
        %v2233 = vrcp.pop %v2202
        %v2234 = vmul.f32 1.0, %v2233
        %v2235 = vrcp.pop %v2203
        %v2236 = vmul.f32 1.0, %v2235
        %v2237 = vrcp.pop %v2204
        %v2238 = vmul.f32 1.0, %v2237
        %v2239 = vrcp.pop %v2205
        %v2240 = vmul.f32 1.0, %v2239
        %v2241 = vrcp.pop %v2206
        %v2242 = vmul.f32 1.0, %v2241
        %v2243 = vrcp.pop %v2207
        %v2244 = vmul.f32 1.0, %v2243
        %v2245 = vrcp.pop %v2208
        %v2246 = vmul.f32 1.0, %v2245
        %v2247 = vrcp.pop %v2209
        %v2248 = vmul.f32 1.0, %v2247
        %v2249 = vrcp.pop %v2210
        %v2250 = vmul.f32 1.0, %v2249
        %v2251 = vrcp.pop %v2211
        %v2252 = vmul.f32 1.0, %v2251
        %v2253 = vrcp.pop %v2212
        %v2254 = vmul.f32 1.0, %v2253
        %v2255 = vrcp.pop %v2213
        %v2256 = vmul.f32 1.0, %v2255
        %v2257 = vrcp.pop %v2214
        %v2258 = vmul.f32 1.0, %v2257
        %v2259 = vrcp.pop %v2215
        %v2260 = vmul.f32 1.0, %v2259
        %v2261 = vrcp.pop %v2216
        %v2262 = vmul.f32 1.0, %v2261
        %v2263 = vrcp.pop %v2217
        %v2264 = vmul.f32 1.0, %v2263
        %v2265 = vrcp.pop %v2218
        %v2266 = vmul.f32 1.0, %v2265
        %v2267 = vmul.f32 %v2099, %v2220
        %v2268 = vmul.f32 %v2100, %v2222
        %v2269 = vmul.f32 %v2101, %v2224
        %v2270 = vmul.f32 %v2102, %v2226
        %v2271 = vmul.f32 %v2103, %v2228
        %v2272 = vmul.f32 %v2104, %v2230
        %v2273 = vmul.f32 %v2105, %v2232
        %v2274 = vmul.f32 %v2106, %v2234
        %v2275 = vmul.f32 %v2107, %v2236
        %v2276 = vmul.f32 %v2108, %v2238
        %v2277 = vmul.f32 %v2109, %v2240
        %v2278 = vmul.f32 %v2110, %v2242
        %v2279 = vmul.f32 %v2111, %v2244
        %v2280 = vmul.f32 %v2112, %v2246
        %v2281 = vmul.f32 %v2113, %v2248
        %v2282 = vmul.f32 %v2114, %v2250
        %v2283 = vmul.f32 %v2115, %v2252
        %v2284 = vmul.f32 %v2116, %v2254
        %v2285 = vmul.f32 %v2117, %v2256
        %v2286 = vmul.f32 %v2118, %v2258
        %v2287 = vmul.f32 %v2119, %v2260
        %v2288 = vmul.f32 %v2120, %v2262
        %v2289 = vmul.f32 %v2121, %v2264
        %v2290 = vmul.f32 %v2122, %v2266
        %2291 = vst [vmem:[%s204] sm:$0xff] %v2267
        %2292 = vst [vmem:[%s204 + $0x8] sm:$0xff] %v2268
        %2293 = vst [vmem:[%s204 + $0x10] sm:$0xff] %v2269
        %2294 = vst [vmem:[%s204 + $0x18] sm:$0xff] %v2270
        %2295 = vst [vmem:[%s204 + $0x20] sm:$0xff] %v2271
        %2296 = vst [vmem:[%s204 + $0x28] sm:$0xff] %v2272
        %2297 = vst [vmem:[%s204 + $0x30] sm:$0xff] %v2273
        %2298 = vst [vmem:[%s204 + $0x38] sm:$0xff] %v2274
        %2299 = vst [vmem:[%s204 + $0x40] sm:$0xff] %v2275
        %2300 = vst [vmem:[%s204 + $0x48] sm:$0xff] %v2276
        %2301 = vst [vmem:[%s204 + $0x50] sm:$0xff] %v2277
        %2302 = vst [vmem:[%s204 + $0x58] sm:$0xff] %v2278
        %2303 = vst [vmem:[%s204 + $0x60] sm:$0xff] %v2279
        %2304 = vst [vmem:[%s204 + $0x68] sm:$0xff] %v2280
        %2305 = vst [vmem:[%s204 + $0x70] sm:$0xff] %v2281
        %2306 = vst [vmem:[%s204 + $0x78] sm:$0xff] %v2282
        %2307 = vst [vmem:[%s204 + $0x80] sm:$0xff] %v2283
        %2308 = vst [vmem:[%s204 + $0x88] sm:$0xff] %v2284
        %2309 = vst [vmem:[%s204 + $0x90] sm:$0xff] %v2285
        %2310 = vst [vmem:[%s204 + $0x98] sm:$0xff] %v2286
        %2311 = vst [vmem:[%s204 + $0xa0] sm:$0xff] %v2287
        %2312 = vst [vmem:[%s204 + $0xa8] sm:$0xff] %v2288
        %2313 = vst [vmem:[%s204 + $0xb0] sm:$0xff] %v2289
        %2314 = vst [vmem:[%s204 + $0xb8] sm:$0xff] %v2290
        %s2315 = sand.u32 %s129, 1
        %s2316 = scalar_lea.sflag [#allocation3], %s2315
        %s2317 = sand.u32 %s129, 1
        %s2318 = smul.addr %s2317, 192
        %s2319 = scalar_lea.vmem [#allocation2], %s2318
        // Predicated region
        $region37: #{tpu_custom_call.1} parent=35 // pred_check
          %p2320 = pneg %p139
        $region38: #{tpu_custom_call.1} parent=35 // pred_check_branch
          %2322 = sbr.rel (%p2320) target = $region40
        $region39: #{tpu_custom_call.1} parent=35 // pred_region
          %s2323 = smul.u32 24, %s23
          %s2325 = ssub.s32 3072, 3072
          %2326 = vsyncadd %s2316, %s2325
          %s2327 = smul.addr %s22, 48
          %s2328 = sadd.s32 %s2323, %s2327
          %s2329 = smul.addr %s2328, 128
          %s2330 = scalar_lea.hbm %s4, %s2329
          %s2331 = sshll.u32 %s2319, 4
          %s2332 = int_to_ptr.vmem [resolvable:$true] %s2331
          %2337 = dma.vmem_to_hbm [thread:$0]  %s2332, 3072, %s2330, %s2316, 128, 128, 8
        $region40: #{tpu_custom_call.1} parent=35 // pred_fallthru
          _
      $region36: #{tpu_custom_call.1} parent=5 // pred_fallthru
        _
      %p2338 = scmp.le.s32.totalorder 2, %s13
      // Predicated region
      $region41: #{tpu_custom_call.1} parent=5 // pred_check
        %p2339 = pneg %p2338
      $region42: #{tpu_custom_call.1} parent=5 // pred_check_branch
        %2341 = sbr.rel (%p2339) target = $region44
      $region43: #{tpu_custom_call.1} parent=5 // pred_region
        %s2342 = ssub.s32 %s13, 2
        // Predicated region
        $region45: #{tpu_custom_call.1} parent=43 // pred_check
          %p2343 = pneg %p145
        $region46: #{tpu_custom_call.1} parent=43 // pred_check_branch
          %2345 = sbr.rel (%p2343) target = $region48
        $region47: #{tpu_custom_call.1} parent=43 // pred_region
          %s2346 = sand.u32 %s130, 1
          %s2347 = scalar_lea.sflag [#allocation3], %s2346
          %s2348 = sand.u32 %s130, 1
          %s2349 = smul.addr %s2348, 192
          %s2350 = scalar_lea.vmem [#allocation2], %s2349
          %2351 = dma.done %s2347, 3072
        $region48: #{tpu_custom_call.1} parent=43 // pred_fallthru
          _
      $region44: #{tpu_custom_call.1} parent=5 // pred_fallthru
        _
    $region6: #{tpu_custom_call.1} parent=1 // loop_footer
      %s17 = sadd.s32 1, %s13
    $region7: #{tpu_custom_call.1} parent=1 // loop_footer_branch
      %12 = sbr.rel target = $region3
    $region8: #{tpu_custom_call.1} parent=1 // loop_exit
      _
    %2352 = vsyncpa [#allocation3], 1
    %s2353 = scalar_lea.sflag [#allocation3], 1
    %2354 = vsyncpa %s2353, 1

</llo_original>
